<compile_context>
chip_gen: v6e
topology: v6e:2x2x1
jax: 0.10.0
libtpu: 0.0.40
codegen_flags: <defaults>
</compile_context>

<pallas_src>
import functools

import jax
import jax.numpy as jnp
import numpy as np
from jax import lax
from jax.experimental import pallas as pl
from jax.experimental.pallas import tpu as pltpu

BN_EPS = 1e-5


def _cnn1d_kernel(x_ref, w1_ref, w2_ref, st_ref, out_ref):
    # x_ref : (bb, L+2, 128)  bf16, channels-last, zero-padded along L and channels
    # w*_ref: (cin, 3*128)    bf16, tap k occupies columns [k*128:(k+1)*128]
    # st_ref: (4, 128)        f32,  rows = [scale1, shift1, scale2, shift2]
    # out_ref: (bb, 128)      f32,  pooled features (lane-dense)
    bb, Lp2, _ = x_ref.shape
    L = Lp2 - 2
    Ch = out_ref.shape[1]

    def conv3(xp, w_ref):
        # Fused k=3 "same" conv: one MXU matmul over the padded sequence, then
        # combine the three tap panels with static sublane-offset slices:
        #   out[t] = xp[t] @ w0 + xp[t+1] @ w1 + xp[t+2] @ w2
        cin = xp.shape[-1]
        y = jnp.dot(xp.reshape(bb * Lp2, cin), w_ref[...],
                    preferred_element_type=jnp.float32).reshape(bb, Lp2, 3 * Ch)
        return (y[:, 0:L, 0:Ch]
                + y[:, 1:L + 1, Ch:2 * Ch]
                + y[:, 2:L + 2, 2 * Ch:3 * Ch])

    s1 = st_ref[0:1, :]
    t1 = st_ref[1:2, :]
    s2 = st_ref[2:3, :]
    t2 = st_ref[3:4, :]

    # conv1 -> bn1 -> relu   (bf16 matmul, f32 epilogue)
    h1 = jnp.maximum(conv3(x_ref[...], w1_ref) * s1 + t1, 0.0)          # (bb, L, Ch) f32

    # zero-pad h1 along L (same padded-input trick) for conv2
    zrow = jnp.zeros((bb, 1, Ch), jnp.bfloat16)
    h1p = jnp.concatenate([zrow, h1.astype(jnp.bfloat16), zrow], axis=1)

    # conv2 -> bn2 -> relu
    h2 = jnp.maximum(conv3(h1p, w2_ref) * s2 + t2, 0.0)                 # (bb, L, Ch) f32

    # MaxPool1d(kernel=2, stride=2) fused with AdaptiveAvgPool1d(1), vectorized:
    #   pairmax[t] = max(h2[t], h2[t+1]); keep even t; average over L//2 windows.
    pairmax = jnp.maximum(h2[:, 0:L - 1, :], h2[:, 1:L, :])             # (bb, L-1, Ch)
    row = lax.broadcasted_iota(jnp.int32, (bb, L - 1, Ch), 1)
    pooled = jnp.sum(jnp.where(row % 2 == 0, pairmax, 0.0), axis=1) * (1.0 / (L // 2))

    # TODO(synk): nn.Dropout(p=0.5) is identity in eval mode; train-mode RNG dropout not implemented.

    out_ref[...] = pooled                                               # lane-dense store


@jax.jit
def cnn1d_forward(x_ncl, params):
    """x_ncl: (B, 105, L) PyTorch-convention input. Returns (B,) logits."""
    B, Cin, L = x_ncl.shape
    Ch = params["conv1_w"].shape[0]          # 128
    Cp = 128                                 # Cin padded to a full lane group
    Lp2 = L + 2

    # Batch blocking: target ~1k matmul rows per grid step (good MXU utilization for
    # short sequences, bounded VMEM for long ones). "parallel" lets multiple blocks
    # spread across v7x's two TensorCores.
    bb = max(1, min(B, 1024 // Lp2 if Lp2 <= 1024 else 1))
    Bp = -(-B // bb) * bb

    # channels-last, pad channels 105->128 and L by one zero row each side; bf16 for MXU.
    x = jnp.transpose(x_ncl, (0, 2, 1)).astype(jnp.float32)             # (B, L, Cin)
    xp = jnp.pad(x, ((0, Bp - B), (1, 1), (0, Cp - Cin))).astype(jnp.bfloat16)

    def fuse_taps(w, cin_pad):
        # PyTorch (Cout, Cin, 3) -> (cin_pad, 3*Cout); tap k in cols [k*Cout:(k+1)*Cout]
        cout, cin, k = w.shape
        wt = jnp.transpose(w, (1, 2, 0)).reshape(cin, k * cout)
        return jnp.pad(wt, ((0, cin_pad - cin), (0, 0))).astype(jnp.bfloat16)

    w1 = fuse_taps(params["conv1_w"], Cp)                               # (128, 384)
    w2 = fuse_taps(params["conv2_w"], Ch)                               # (128, 384)

    # fold conv bias + BatchNorm (running stats, eval mode) into per-channel scale/shift
    s1 = params["bn1_g"] / jnp.sqrt(params["bn1_v"] + BN_EPS)
    t1 = params["bn1_b"] + (params["conv1_b"] - params["bn1_m"]) * s1
    s2 = params["bn2_g"] / jnp.sqrt(params["bn2_v"] + BN_EPS)
    t2 = params["bn2_b"] + (params["conv2_b"] - params["bn2_m"]) * s2
    st = jnp.stack([s1, t1, s2, t2]).astype(jnp.float32)                # (4, 128)

    pooled = pl.pallas_call(
        _cnn1d_kernel,
        out_shape=jax.ShapeDtypeStruct((Bp, Ch), jnp.float32),
        grid=(Bp // bb,),
        in_specs=[
            pl.BlockSpec((bb, Lp2, Cp), lambda i: (i, 0, 0)),
            pl.BlockSpec((Cp, 3 * Ch), lambda i: (0, 0)),
            pl.BlockSpec((Ch, 3 * Ch), lambda i: (0, 0)),
            pl.BlockSpec((4, Ch), lambda i: (0, 0)),
        ],
        out_specs=pl.BlockSpec((bb, Ch), lambda i: (i, 0)),
        compiler_params=pltpu.CompilerParams(
            dimension_semantics=("parallel",)),
    )(xp, w1, w2, st)

    # trivial 128 -> 1 fc + squeeze stays in XLA (keeps kernel stores lane-dense)
    out = pooled[:B] @ jnp.transpose(params["fc_w"]) + params["fc_b"]   # (B, 1)
    return out[:, 0]                                                    # (B,)


def ref_forward(x_ncl, p):
    """Pure-JAX (f32) reference matching PyTorch eval-mode forward."""
    def conv1d(x, w, b):
        y = lax.conv_general_dilated(x, w, (1,), [(1, 1)],
                                     dimension_numbers=("NCH", "OIH", "NCH"))
        return y + b[None, :, None]

    def bn(x, g, bt, m, v):
        return ((x - m[None, :, None]) / jnp.sqrt(v[None, :, None] + BN_EPS)
                * g[None, :, None] + bt[None, :, None])

    h = jnp.maximum(bn(conv1d(x_ncl, p["conv1_w"], p["conv1_b"]),
                       p["bn1_g"], p["bn1_b"], p["bn1_m"], p["bn1_v"]), 0.0)
    h = jnp.maximum(bn(conv1d(h, p["conv2_w"], p["conv2_b"]),
                       p["bn2_g"], p["bn2_b"], p["bn2_m"], p["bn2_v"]), 0.0)
    B, C, L = h.shape
    h = h.reshape(B, C, L // 2, 2).max(axis=-1)     # MaxPool1d(2)
    pooled = h.mean(axis=-1)                        # AdaptiveAvgPool1d(1).squeeze(-1)
    return (pooled @ p["fc_w"].T + p["fc_b"])[:, 0]


if __name__ == "__main__":
    Cin, Ch, B, L = 105, 128, 2, 16
    key = jax.random.PRNGKey(0)
    ks = jax.random.split(key, 15)

    params = {
        "conv1_w": 0.05 * jax.random.normal(ks[0], (Ch, Cin, 3), jnp.float32),
        "conv1_b": 0.05 * jax.random.normal(ks[1], (Ch,), jnp.float32),
        "bn1_g": 1.0 + 0.1 * jax.random.normal(ks[2], (Ch,), jnp.float32),
        "bn1_b": 0.1 * jax.random.normal(ks[3], (Ch,), jnp.float32),
        "bn1_m": 0.1 * jax.random.normal(ks[4], (Ch,), jnp.float32),
        "bn1_v": jax.random.uniform(ks[5], (Ch,), jnp.float32, 0.5, 1.5),
        "conv2_w": 0.05 * jax.random.normal(ks[6], (Ch, Ch, 3), jnp.float32),
        "conv2_b": 0.05 * jax.random.normal(ks[7], (Ch,), jnp.float32),
        "bn2_g": 1.0 + 0.1 * jax.random.normal(ks[8], (Ch,), jnp.float32),
        "bn2_b": 0.1 * jax.random.normal(ks[9], (Ch,), jnp.float32),
        "bn2_m": 0.1 * jax.random.normal(ks[10], (Ch,), jnp.float32),
        "bn2_v": jax.random.uniform(ks[11], (Ch,), jnp.float32, 0.5, 1.5),
        "fc_w": 0.1 * jax.random.normal(ks[12], (1, Ch), jnp.float32),
        "fc_b": 0.1 * jax.random.normal(ks[13], (1,), jnp.float32),
    }
    # PyTorch-convention input: (batch, channels=105, length) i.e. NCL
    x = jax.random.normal(ks[14], (B, Cin, L), jnp.float32)

    out = jax.block_until_ready(cnn1d_forward(x, params))
    assert out.shape == (B,), out.shape

    ref = np.asarray(ref_forward(x, params))
    np.testing.assert_allclose(np.asarray(out), ref, rtol=5e-2, atol=5e-2)

    print("KERNEL_OK")
</pallas_src>

<mosaic_0001>
module attributes {stable_mosaic.version = 11 : i64} {
  func.func @_cnn1d_kernel(%arg0: i32, %arg1: memref<2x18x128xbf16, #tpu.memory_space<vmem>>, %arg2: memref<128x384xbf16, #tpu.memory_space<vmem>>, %arg3: memref<128x384xbf16, #tpu.memory_space<vmem>>, %arg4: memref<4x128xf32, #tpu.memory_space<vmem>>, %arg5: memref<2x128xf32, #tpu.memory_space<vmem>>) attributes {dimension_semantics = [#tpu.dimension_semantics<parallel>], iteration_bounds = array<i64: 1>, scalar_prefetch = 0 : i64, scratch_operands = 0 : i64, tpu.core_type = #tpu.core_type<tc>, window_params = [{transform_indices = @transform_0, window_bounds = array<i64: 2, 18, 128>}, {pipeline_mode = #tpu.pipeline_mode<synchronous>, transform_indices = @transform_1, window_bounds = array<i64: 128, 384>}, {pipeline_mode = #tpu.pipeline_mode<synchronous>, transform_indices = @transform_2, window_bounds = array<i64: 128, 384>}, {pipeline_mode = #tpu.pipeline_mode<synchronous>, transform_indices = @transform_3, window_bounds = array<i64: 4, 128>}, {transform_indices = @transform_4, window_bounds = array<i64: 2, 128>}]} {
    %c0 = arith.constant 0 : index
    %c0_0 = arith.constant 0 : index
    %0 = vector.load %arg4[%c0, %c0_0] : memref<4x128xf32, #tpu.memory_space<vmem>>, vector<1x128xf32>
    %c1 = arith.constant 1 : index
    %c0_1 = arith.constant 0 : index
    %1 = vector.load %arg4[%c1, %c0_1] : memref<4x128xf32, #tpu.memory_space<vmem>>, vector<1x128xf32>
    %c2 = arith.constant 2 : index
    %c0_2 = arith.constant 0 : index
    %2 = vector.load %arg4[%c2, %c0_2] : memref<4x128xf32, #tpu.memory_space<vmem>>, vector<1x128xf32>
    %c3 = arith.constant 3 : index
    %c0_3 = arith.constant 0 : index
    %3 = vector.load %arg4[%c3, %c0_3] : memref<4x128xf32, #tpu.memory_space<vmem>>, vector<1x128xf32>
    %c0_4 = arith.constant 0 : index
    %c0_5 = arith.constant 0 : index
    %c0_6 = arith.constant 0 : index
    %4 = vector.load %arg1[%c0_4, %c0_5, %c0_6] : memref<2x18x128xbf16, #tpu.memory_space<vmem>>, vector<2x18x128xbf16>
    %5 = vector.shape_cast %4 : vector<2x18x128xbf16> to vector<36x128xbf16>
    %c0_7 = arith.constant 0 : index
    %c0_8 = arith.constant 0 : index
    %6 = vector.load %arg2[%c0_7, %c0_8] : memref<128x384xbf16, #tpu.memory_space<vmem>>, vector<128x384xbf16>
    %cst = arith.constant dense<0.000000e+00> : vector<36x384xf32>
    %7 = tpu.matmul %5, %6, %cst {dimension_numbers = #tpu.dot_dimension_numbers<[1], [0], [0], [1], [0, 0, 1, 1], [], []>} : vector<36x128xbf16>, vector<128x384xbf16>, vector<36x384xf32> -> vector<36x384xf32>
    %8 = vector.shape_cast %7 : vector<36x384xf32> to vector<2x18x384xf32>
    %9 = vector.extract_strided_slice %8 {offsets = [0, 0, 0], sizes = [2, 16, 128], strides = [1, 1, 1]} : vector<2x18x384xf32> to vector<2x16x128xf32>
    %10 = vector.extract_strided_slice %8 {offsets = [0, 1, 128], sizes = [2, 16, 128], strides = [1, 1, 1]} : vector<2x18x384xf32> to vector<2x16x128xf32>
    %11 = arith.addf %9, %10 : vector<2x16x128xf32>
    %12 = vector.extract_strided_slice %8 {offsets = [0, 2, 256], sizes = [2, 16, 128], strides = [1, 1, 1]} : vector<2x18x384xf32> to vector<2x16x128xf32>
    %13 = arith.addf %11, %12 : vector<2x16x128xf32>
    %14 = vector.shape_cast %0 : vector<1x128xf32> to vector<1x1x128xf32>
    %15 = vector.broadcast %14 : vector<1x1x128xf32> to vector<2x16x128xf32>
    %16 = arith.mulf %13, %15 : vector<2x16x128xf32>
    %17 = vector.shape_cast %1 : vector<1x128xf32> to vector<1x1x128xf32>
    %18 = vector.broadcast %17 : vector<1x1x128xf32> to vector<2x16x128xf32>
    %19 = arith.addf %16, %18 : vector<2x16x128xf32>
    %cst_9 = arith.constant 0.000000e+00 : f32
    %20 = vector.broadcast %cst_9 : f32 to vector<2x16x128xf32>
    %21 = arith.maximumf %19, %20 : vector<2x16x128xf32>
    %cst_10 = arith.constant 0.000000e+00 : bf16
    %22 = vector.broadcast %cst_10 : bf16 to vector<2x1x128xbf16>
    %23 = arith.truncf %21 : vector<2x16x128xf32> to vector<2x16x128xbf16>
    %24 = tpu.concatenate %22, %23, %22 in 1 : vector<2x1x128xbf16>, vector<2x16x128xbf16>, vector<2x1x128xbf16> -> vector<2x18x128xbf16>
    %25 = vector.shape_cast %24 : vector<2x18x128xbf16> to vector<36x128xbf16>
    %c0_11 = arith.constant 0 : index
    %c0_12 = arith.constant 0 : index
    %26 = vector.load %arg3[%c0_11, %c0_12] : memref<128x384xbf16, #tpu.memory_space<vmem>>, vector<128x384xbf16>
    %cst_13 = arith.constant dense<0.000000e+00> : vector<36x384xf32>
    %27 = tpu.matmul %25, %26, %cst_13 {dimension_numbers = #tpu.dot_dimension_numbers<[1], [0], [0], [1], [0, 0, 1, 1], [], []>} : vector<36x128xbf16>, vector<128x384xbf16>, vector<36x384xf32> -> vector<36x384xf32>
    %28 = vector.shape_cast %27 : vector<36x384xf32> to vector<2x18x384xf32>
    %29 = vector.extract_strided_slice %28 {offsets = [0, 0, 0], sizes = [2, 16, 128], strides = [1, 1, 1]} : vector<2x18x384xf32> to vector<2x16x128xf32>
    %30 = vector.extract_strided_slice %28 {offsets = [0, 1, 128], sizes = [2, 16, 128], strides = [1, 1, 1]} : vector<2x18x384xf32> to vector<2x16x128xf32>
    %31 = arith.addf %29, %30 : vector<2x16x128xf32>
    %32 = vector.extract_strided_slice %28 {offsets = [0, 2, 256], sizes = [2, 16, 128], strides = [1, 1, 1]} : vector<2x18x384xf32> to vector<2x16x128xf32>
    %33 = arith.addf %31, %32 : vector<2x16x128xf32>
    %34 = vector.shape_cast %2 : vector<1x128xf32> to vector<1x1x128xf32>
    %35 = vector.broadcast %34 : vector<1x1x128xf32> to vector<2x16x128xf32>
    %36 = arith.mulf %33, %35 : vector<2x16x128xf32>
    %37 = vector.shape_cast %3 : vector<1x128xf32> to vector<1x1x128xf32>
    %38 = vector.broadcast %37 : vector<1x1x128xf32> to vector<2x16x128xf32>
    %39 = arith.addf %36, %38 : vector<2x16x128xf32>
    %cst_14 = arith.constant 0.000000e+00 : f32
    %40 = vector.broadcast %cst_14 : f32 to vector<2x16x128xf32>
    %41 = arith.maximumf %39, %40 : vector<2x16x128xf32>
    %42 = vector.extract_strided_slice %41 {offsets = [0, 0, 0], sizes = [2, 15, 128], strides = [1, 1, 1]} : vector<2x16x128xf32> to vector<2x15x128xf32>
    %43 = vector.extract_strided_slice %41 {offsets = [0, 1, 0], sizes = [2, 15, 128], strides = [1, 1, 1]} : vector<2x16x128xf32> to vector<2x15x128xf32>
    %44 = arith.maximumf %42, %43 : vector<2x15x128xf32>
    %45 = tpu.iota {dimensions = array<i32: 1>} : vector<2x15x128xi32>
    %c2_i32 = arith.constant 2 : i32
    %c0_i32 = arith.constant 0 : i32
    %46 = arith.cmpi eq, %c2_i32, %c0_i32 : i32
    %c1_i32 = arith.constant 1 : i32
    %47 = arith.select %46, %c1_i32, %c2_i32 : i32
    %48 = vector.broadcast %47 : i32 to vector<2x15x128xi32>
    %49 = arith.remsi %45, %48 : vector<2x15x128xi32>
    %c0_i32_15 = arith.constant 0 : i32
    %50 = vector.broadcast %c0_i32_15 : i32 to vector<2x15x128xi32>
    %51 = arith.cmpi ne, %49, %50 : vector<2x15x128xi32>
    %c0_i32_16 = arith.constant 0 : i32
    %52 = vector.broadcast %c0_i32_16 : i32 to vector<2x15x128xi32>
    %53 = arith.cmpi slt, %49, %52 : vector<2x15x128xi32>
    %c0_i32_17 = arith.constant 0 : i32
    %54 = arith.cmpi slt, %47, %c0_i32_17 : i32
    %55 = vector.broadcast %54 : i1 to vector<2x15x128xi1>
    %56 = vector.broadcast %55 : vector<2x15x128xi1> to vector<2x15x128xi1>
    %57 = arith.xori %53, %56 : vector<2x15x128xi1>
    %58 = arith.andi %57, %51 : vector<2x15x128xi1>
    %59 = vector.broadcast %47 : i32 to vector<2x15x128xi32>
    %60 = arith.addi %49, %59 : vector<2x15x128xi32>
    %61 = arith.select %58, %60, %49 : vector<2x15x128xi1>, vector<2x15x128xi32>
    %c0_i32_18 = arith.constant 0 : i32
    %62 = vector.broadcast %c0_i32_18 : i32 to vector<2x15x128xi32>
    %63 = arith.cmpi eq, %61, %62 : vector<2x15x128xi32>
    %cst_19 = arith.constant 0.000000e+00 : f32
    %64 = vector.broadcast %cst_19 : f32 to vector<2x15x128xf32>
    %65 = arith.select %63, %44, %64 : vector<2x15x128xi1>, vector<2x15x128xf32>
    %cst_20 = arith.constant dense<0.000000e+00> : vector<2x128xf32>
    %66 = vector.multi_reduction <add>, %65, %cst_20 [1] : vector<2x15x128xf32> to vector<2x128xf32>
    %cst_21 = arith.constant 1.250000e-01 : f32
    %67 = vector.broadcast %cst_21 : f32 to vector<2x128xf32>
    %68 = arith.mulf %66, %67 : vector<2x128xf32>
    %c0_22 = arith.constant 0 : index
    %c0_23 = arith.constant 0 : index
    %69 = vector.load %arg5[%c0_22, %c0_23] : memref<2x128xf32, #tpu.memory_space<vmem>>, vector<2x128xf32>
    tpu.vector_store %arg5[%c0_22, %c0_23], %68 {strides = array<i32>} : memref<2x128xf32, #tpu.memory_space<vmem>>, vector<2x128xf32>,
    return
  }
  func.func @transform_0(%arg0: i32) -> (i32, i32, i32) {
    %c0_i32 = arith.constant 0 : i32
    %c0_i32_0 = arith.constant 0 : i32
    %c0_i32_1 = arith.constant 0 : i32
    return %arg0, %c0_i32, %c0_i32_0 : i32, i32, i32
  }
  func.func @transform_1(%arg0: i32) -> (i32, i32) {
    %c0_i32 = arith.constant 0 : i32
    %c0_i32_0 = arith.constant 0 : i32
    %c0_i32_1 = arith.constant 0 : i32
    return %c0_i32, %c0_i32_0 : i32, i32
  }
  func.func @transform_2(%arg0: i32) -> (i32, i32) {
    %c0_i32 = arith.constant 0 : i32
    %c0_i32_0 = arith.constant 0 : i32
    %c0_i32_1 = arith.constant 0 : i32
    return %c0_i32, %c0_i32_0 : i32, i32
  }
  func.func @transform_3(%arg0: i32) -> (i32, i32) {
    %c0_i32 = arith.constant 0 : i32
    %c0_i32_0 = arith.constant 0 : i32
    %c0_i32_1 = arith.constant 0 : i32
    return %c0_i32, %c0_i32_0 : i32, i32
  }
  func.func @transform_4(%arg0: i32) -> (i32, i32) {
    %c0_i32 = arith.constant 0 : i32
    %c0_i32_0 = arith.constant 0 : i32
    return %arg0, %c0_i32 : i32, i32
  }
}

</mosaic_0001>

<llo_original>
// kernel: cnn1d_forward.1
$region0: #{cnn1d_forward.1}
  #allocation0 [shape = 'u32[]', space=smem, size = 0x4, offset = 0x4, fixed_abs, tag = 'smem constant byte address 0x4 - core index']
  #allocation1 [shape = 'u32[144,128]{1,0:T(1,128)}', space=vmem, size = 0x12000, scoped, tag = 'internal scratch']
  %s0 = inlined_call_operand.vmem [shape: bf16[2,18,128], index: 0, kind: input, shape index: {}]
  %s1 = inlined_call_operand.vmem [shape: bf16[128,384], index: 1, kind: input, shape index: {}]
  %s2 = inlined_call_operand.vmem [shape: bf16[128,384], index: 2, kind: input, shape index: {}]
  %s3 = inlined_call_operand.vmem [shape: f32[4,128], index: 3, kind: input, shape index: {}]
  %s4 = inlined_call_operand.vmem [shape: f32[2,128], index: 4, kind: output, shape index: {}]
  %s5 = sld [smem:[#allocation0]]
  $region26: #{cnn1d_forward.1} parent=0
    _
  %s7 = ssub.s32 1, %s5
  %s8 = scalar_select 0, %s7, %s5
  // Predicated region
  $region2: #{cnn1d_forward.1} parent=0 // pred_check
    _
  $region3: #{cnn1d_forward.1} parent=0 // pred_check_branch
    %10 = sbr.rel (0) target = $region5
  $region4: #{cnn1d_forward.1} parent=0 // pred_region
    _
  $region5: #{cnn1d_forward.1} parent=0 // pred_fallthru
    _
  // Predicated region
  $region6: #{cnn1d_forward.1} parent=0 // pred_check
    _
  $region7: #{cnn1d_forward.1} parent=0 // pred_check_branch
    %12 = sbr.rel (0) target = $region9
  $region8: #{cnn1d_forward.1} parent=0 // pred_region
    _
  $region9: #{cnn1d_forward.1} parent=0 // pred_fallthru
    _
  // Predicated region
  $region10: #{cnn1d_forward.1} parent=0 // pred_check
    _
  $region11: #{cnn1d_forward.1} parent=0 // pred_check_branch
    %14 = sbr.rel (0) target = $region13
  $region12: #{cnn1d_forward.1} parent=0 // pred_region
    _
  $region13: #{cnn1d_forward.1} parent=0 // pred_fallthru
    _
  // Predicated region
  $region14: #{cnn1d_forward.1} parent=0 // pred_check
    _
  $region15: #{cnn1d_forward.1} parent=0 // pred_check_branch
    %16 = sbr.rel (0) target = $region17
  $region16: #{cnn1d_forward.1} parent=0 // pred_region
    _
  $region17: #{cnn1d_forward.1} parent=0 // pred_fallthru
    _
  %v18 = vld [vmem:[%s3] sm:$0x1]
  %v19 = vld [vmem:[%s3 + $0x1] sm:$0x1]
  %v20 = vld [vmem:[%s3 + $0x2] sm:$0x1]
  %v21 = vld [vmem:[%s3 + $0x3] sm:$0x1]
  %v22 = vld [vmem:[%s0] sm:$0xf]
  %v23 = vld [vmem:[%s0 + $0x4] sm:$0xf]
  %v24 = vld [vmem:[%s0 + $0x8] sm:$0x1]
  %v25 = vld [vmem:[%s0 + $0xc] sm:$0xf]
  %v26 = vld [vmem:[%s0 + $0x10] sm:$0xf]
  %v27 = vld [vmem:[%s0 + $0x14] sm:$0x1]
  %v35 = vunpack.c.l.s4 1966171168
  %v36 = vunpack.c.0.s8 %v35
  %v37 = vlaneseq
  %v38 = vshrl.u32 %v37, 7
  %v39 = vsub.s32 %v36, %v38
  %v40 = vrot.slane %v22, %v39
  %v41 = vcombine.high %v40, %v40
  %v43 = vunpack.c.l.s4 1966171168
  %v44 = vunpack.c.0.s8 %v43
  %v45 = vlaneseq
  %v46 = vshrl.u32 %v45, 7
  %v47 = vsub.s32 %v44, %v46
  %v48 = vrot.slane %v40, %v47
  %v50 = vunpack.c.l.s4 1966171168
  %v51 = vunpack.c.0.s8 %v50
  %v52 = vlaneseq
  %v53 = vshrl.u32 %v52, 7
  %v54 = vsub.s32 %v51, %v53
  %v55 = vrot.slane %v41, %v54
  %v56 = vcombine.high %v48, %v48
  %v57 = vcombine.high %v55, %v55
  %v59 = vunpack.c.l.s4 1966171168
  %v60 = vunpack.c.0.s8 %v59
  %v61 = vlaneseq
  %v62 = vshrl.u32 %v61, 7
  %v63 = vsub.s32 %v60, %v62
  %v64 = vrot.slane %v23, %v63
  %v65 = vcombine.high %v64, %v64
  %v67 = vunpack.c.l.s4 1966171168
  %v68 = vunpack.c.0.s8 %v67
  %v69 = vlaneseq
  %v70 = vshrl.u32 %v69, 7
  %v71 = vsub.s32 %v68, %v70
  %v72 = vrot.slane %v64, %v71
  %v74 = vunpack.c.l.s4 1966171168
  %v75 = vunpack.c.0.s8 %v74
  %v76 = vlaneseq
  %v77 = vshrl.u32 %v76, 7
  %v78 = vsub.s32 %v75, %v77
  %v79 = vrot.slane %v65, %v78
  %v80 = vcombine.high %v72, %v72
  %v81 = vcombine.high %v79, %v79
  %v83 = vunpack.c.l.s4 1966171168
  %v84 = vunpack.c.0.s8 %v83
  %v85 = vlaneseq
  %v86 = vshrl.u32 %v85, 7
  %v87 = vsub.s32 %v84, %v86
  %v88 = vrot.slane %v24, %v87
  %v90 = vunpack.c.l.s4 1966171168
  %v91 = vunpack.c.0.s8 %v90
  %v92 = vlaneseq
  %v93 = vshrl.u32 %v92, 7
  %v94 = vsub.s32 %v91, %v93
  %v95 = vrot.slane %v88, %v94
  %v97 = vunpack.c.l.s4 1966171168
  %v98 = vunpack.c.0.s8 %v97
  %v99 = vlaneseq
  %v100 = vshrl.u32 %v99, 7
  %v101 = vsub.s32 %v98, %v100
  %v102 = vrot.slane %v25, %v101
  %v103 = vcombine.high %v102, %v102
  %v105 = vunpack.c.l.s4 1966171168
  %v106 = vunpack.c.0.s8 %v105
  %v107 = vlaneseq
  %v108 = vshrl.u32 %v107, 7
  %v109 = vsub.s32 %v106, %v108
  %v110 = vrot.slane %v102, %v109
  %v112 = vunpack.c.l.s4 1966171168
  %v113 = vunpack.c.0.s8 %v112
  %v114 = vlaneseq
  %v115 = vshrl.u32 %v114, 7
  %v116 = vsub.s32 %v113, %v115
  %v117 = vrot.slane %v103, %v116
  %v118 = vcombine.high %v110, %v110
  %v119 = vcombine.high %v117, %v117
  %v121 = vunpack.c.l.s4 1966171168
  %v122 = vunpack.c.0.s8 %v121
  %v123 = vlaneseq
  %v124 = vshrl.u32 %v123, 7
  %v125 = vsub.s32 %v122, %v124
  %v126 = vrot.slane %v26, %v125
  %v127 = vcombine.high %v126, %v126
  %v129 = vunpack.c.l.s4 1966171168
  %v130 = vunpack.c.0.s8 %v129
  %v131 = vlaneseq
  %v132 = vshrl.u32 %v131, 7
  %v133 = vsub.s32 %v130, %v132
  %v134 = vrot.slane %v126, %v133
  %v136 = vunpack.c.l.s4 1966171168
  %v137 = vunpack.c.0.s8 %v136
  %v138 = vlaneseq
  %v139 = vshrl.u32 %v138, 7
  %v140 = vsub.s32 %v137, %v139
  %v141 = vrot.slane %v127, %v140
  %v142 = vcombine.high %v134, %v134
  %v143 = vcombine.high %v141, %v141
  %v145 = vunpack.c.l.s4 1966171168
  %v146 = vunpack.c.0.s8 %v145
  %v147 = vlaneseq
  %v148 = vshrl.u32 %v147, 7
  %v149 = vsub.s32 %v146, %v148
  %v150 = vrot.slane %v27, %v149
  %v152 = vunpack.c.l.s4 1966171168
  %v153 = vunpack.c.0.s8 %v152
  %v154 = vlaneseq
  %v155 = vshrl.u32 %v154, 7
  %v156 = vsub.s32 %v153, %v155
  %v157 = vrot.slane %v150, %v156
  %v158 = vld [vmem:[%s1] sm:$0xff]
  %v159 = vld [vmem:[%s1 + $0x8] sm:$0xf]
  %v160 = vld [vmem:[%s1 + $0xc] sm:$0xff]
  %v161 = vld [vmem:[%s1 + $0x14] sm:$0xf]
  %v162 = vld [vmem:[%s1 + $0x18] sm:$0xff]
  %v163 = vld [vmem:[%s1 + $0x20] sm:$0xf]
  %v164 = vld [vmem:[%s1 + $0x24] sm:$0xff]
  %v165 = vld [vmem:[%s1 + $0x2c] sm:$0xf]
  %v166 = vld [vmem:[%s1 + $0x30] sm:$0xff]
  %v167 = vld [vmem:[%s1 + $0x38] sm:$0xf]
  %v168 = vld [vmem:[%s1 + $0x3c] sm:$0xff]
  %v169 = vld [vmem:[%s1 + $0x44] sm:$0xf]
  %v170 = vld [vmem:[%s1 + $0x48] sm:$0xff]
  %v171 = vld [vmem:[%s1 + $0x50] sm:$0xf]
  %v172 = vld [vmem:[%s1 + $0x54] sm:$0xff]
  %v173 = vld [vmem:[%s1 + $0x5c] sm:$0xf]
  %v174 = vld [vmem:[%s1 + $0x60] sm:$0xff]
  %v175 = vld [vmem:[%s1 + $0x68] sm:$0xf]
  %v176 = vld [vmem:[%s1 + $0x6c] sm:$0xff]
  %v177 = vld [vmem:[%s1 + $0x74] sm:$0xf]
  %v178 = vld [vmem:[%s1 + $0x78] sm:$0xff]
  %v179 = vld [vmem:[%s1 + $0x80] sm:$0xf]
  %v180 = vld [vmem:[%s1 + $0x84] sm:$0xff]
  %v181 = vld [vmem:[%s1 + $0x8c] sm:$0xf]
  %v182 = vld [vmem:[%s1 + $0x90] sm:$0xff]
  %v183 = vld [vmem:[%s1 + $0x98] sm:$0xf]
  %v184 = vld [vmem:[%s1 + $0x9c] sm:$0xff]
  %v185 = vld [vmem:[%s1 + $0xa4] sm:$0xf]
  %v186 = vld [vmem:[%s1 + $0xa8] sm:$0xff]
  %v187 = vld [vmem:[%s1 + $0xb0] sm:$0xf]
  %v188 = vld [vmem:[%s1 + $0xb4] sm:$0xff]
  %v189 = vld [vmem:[%s1 + $0xbc] sm:$0xf]
  %v190 = vcombine.low %v48, %v55
  %v191 = vcombine.low %v56, %v57
  %v192 = vcombine.low %v72, %v79
  %v193 = vcombine.low %v80, %v81
  %v195 = vunpack.c.l.s4 1966171168
  %v196 = vunpack.c.0.s8 %v195
  %v197 = vlaneseq
  %v198 = vshrl.u32 %v197, 7
  %v199 = vsub.s32 %v196, %v198
  %v200 = vrot.slane %v190, %v199
  %v202 = vunpack.c.l.s4 1966171168
  %v203 = vunpack.c.0.s8 %v202
  %v204 = vlaneseq
  %v205 = vshrl.u32 %v204, 7
  %v206 = vsub.s32 %v203, %v205
  %v207 = vrot.slane %v191, %v206
  %v209 = vunpack.c.l.s4 1966171168
  %v210 = vunpack.c.0.s8 %v209
  %v211 = vlaneseq
  %v212 = vshrl.u32 %v211, 7
  %v213 = vsub.s32 %v210, %v212
  %v214 = vrot.slane %v192, %v213
  %v216 = vunpack.c.l.s4 1966171168
  %v217 = vunpack.c.0.s8 %v216
  %v218 = vlaneseq
  %v219 = vshrl.u32 %v218, 7
  %v220 = vsub.s32 %v217, %v219
  %v221 = vrot.slane %v193, %v220
  %v222 = vcombine.low %v200, %v207
  %v223 = vcombine.low %v214, %v221
  %v225 = vunpack.c.l.s4 1966171168
  %v226 = vunpack.c.0.s8 %v225
  %v227 = vlaneseq
  %v228 = vshrl.u32 %v227, 7
  %v229 = vsub.s32 %v226, %v228
  %v230 = vrot.slane %v222, %v229
  %v232 = vunpack.c.l.s4 1966171168
  %v233 = vunpack.c.0.s8 %v232
  %v234 = vlaneseq
  %v235 = vshrl.u32 %v234, 7
  %v236 = vsub.s32 %v233, %v235
  %v237 = vrot.slane %v223, %v236
  %v238 = vcombine.low %v230, %v237
  %v239 = vcombine.low %v95, %v110
  %v240 = vcombine.low %v117, %v118
  %v241 = vcombine.low %v119, %v134
  %v242 = vcombine.low %v141, %v142
  %v244 = vunpack.c.l.s4 1966171168
  %v245 = vunpack.c.0.s8 %v244
  %v246 = vlaneseq
  %v247 = vshrl.u32 %v246, 7
  %v248 = vsub.s32 %v245, %v247
  %v249 = vrot.slane %v239, %v248
  %v251 = vunpack.c.l.s4 1966171168
  %v252 = vunpack.c.0.s8 %v251
  %v253 = vlaneseq
  %v254 = vshrl.u32 %v253, 7
  %v255 = vsub.s32 %v252, %v254
  %v256 = vrot.slane %v240, %v255
  %v258 = vunpack.c.l.s4 1966171168
  %v259 = vunpack.c.0.s8 %v258
  %v260 = vlaneseq
  %v261 = vshrl.u32 %v260, 7
  %v262 = vsub.s32 %v259, %v261
  %v263 = vrot.slane %v241, %v262
  %v265 = vunpack.c.l.s4 1966171168
  %v266 = vunpack.c.0.s8 %v265
  %v267 = vlaneseq
  %v268 = vshrl.u32 %v267, 7
  %v269 = vsub.s32 %v266, %v268
  %v270 = vrot.slane %v242, %v269
  %v271 = vcombine.low %v249, %v256
  %v272 = vcombine.low %v263, %v270
  %v274 = vunpack.c.l.s4 1966171168
  %v275 = vunpack.c.0.s8 %v274
  %v276 = vlaneseq
  %v277 = vshrl.u32 %v276, 7
  %v278 = vsub.s32 %v275, %v277
  %v279 = vrot.slane %v271, %v278
  %v281 = vunpack.c.l.s4 1966171168
  %v282 = vunpack.c.0.s8 %v281
  %v283 = vlaneseq
  %v284 = vshrl.u32 %v283, 7
  %v285 = vsub.s32 %v282, %v284
  %v286 = vrot.slane %v272, %v285
  %v287 = vcombine.low %v279, %v286
  %v288 = vcombine.low %v143, %v157
  %v290 = vunpack.c.l.s4 1966171168
  %v291 = vunpack.c.0.s8 %v290
  %v292 = vlaneseq
  %v293 = vshrl.u32 %v292, 7
  %v294 = vsub.s32 %v291, %v293
  %v295 = vrot.slane %v288, %v294
  %v297 = vunpack.c.l.s4 1966171168
  %v298 = vunpack.c.0.s8 %v297
  %v299 = vlaneseq
  %v300 = vshrl.u32 %v299, 7
  %v301 = vsub.s32 %v298, %v300
  %v302 = vrot.slane %v295, %v301
  %v338 = vunpack.c.l.b16 %v158
  %v339 = vunpack.c.h.b16 %v158
  %v340 = vunpack.c.l.b16 %v159
  %v341 = vunpack.c.l.b16 %v160
  %v342 = vunpack.c.h.b16 %v160
  %v343 = vunpack.c.l.b16 %v161
  %v344 = vunpack.c.l.b16 %v162
  %v345 = vunpack.c.h.b16 %v162
  %v346 = vunpack.c.l.b16 %v163
  %v347 = vunpack.c.l.b16 %v164
  %v348 = vunpack.c.h.b16 %v164
  %v349 = vunpack.c.l.b16 %v165
  %v350 = vunpack.c.l.b16 %v166
  %v351 = vunpack.c.h.b16 %v166
  %v352 = vunpack.c.l.b16 %v167
  %v353 = vunpack.c.l.b16 %v168
  %v354 = vunpack.c.h.b16 %v168
  %v355 = vunpack.c.l.b16 %v169
  %v356 = vunpack.c.l.b16 %v170
  %v357 = vunpack.c.h.b16 %v170
  %v358 = vunpack.c.l.b16 %v171
  %v359 = vunpack.c.l.b16 %v172
  %v360 = vunpack.c.h.b16 %v172
  %v361 = vunpack.c.l.b16 %v173
  %v362 = vunpack.c.l.b16 %v174
  %v363 = vunpack.c.h.b16 %v174
  %v364 = vunpack.c.l.b16 %v175
  %v365 = vunpack.c.l.b16 %v176
  %v366 = vunpack.c.h.b16 %v176
  %v367 = vunpack.c.l.b16 %v177
  %v368 = vunpack.c.l.b16 %v178
  %v369 = vunpack.c.h.b16 %v178
  %v370 = vunpack.c.l.b16 %v179
  %v371 = vunpack.c.l.b16 %v180
  %v372 = vunpack.c.h.b16 %v180
  %v373 = vunpack.c.l.b16 %v181
  %v374 = vunpack.c.l.b16 %v182
  %v375 = vunpack.c.h.b16 %v182
  %v376 = vunpack.c.l.b16 %v183
  %v377 = vunpack.c.l.b16 %v184
  %v378 = vunpack.c.h.b16 %v184
  %v379 = vunpack.c.l.b16 %v185
  %v380 = vunpack.c.l.b16 %v186
  %v381 = vunpack.c.h.b16 %v186
  %v382 = vunpack.c.l.b16 %v187
  %v383 = vunpack.c.l.b16 %v188
  %v384 = vunpack.c.h.b16 %v188
  %v385 = vunpack.c.l.b16 %v189
  %v386 = vpack.c.b16 %v341, %v338
  %v387 = vpack.c.b16 %v342, %v339
  %v388 = vpack.c.b16 %v343, %v340
  %v389 = vpack.c.b16 %v347, %v344
  %v390 = vpack.c.b16 %v348, %v345
  %v391 = vpack.c.b16 %v349, %v346
  %v392 = vpack.c.b16 %v353, %v350
  %v393 = vpack.c.b16 %v354, %v351
  %v394 = vpack.c.b16 %v355, %v352
  %v395 = vpack.c.b16 %v359, %v356
  %v396 = vpack.c.b16 %v360, %v357
  %v397 = vpack.c.b16 %v361, %v358
  %v398 = vpack.c.b16 %v365, %v362
  %v399 = vpack.c.b16 %v366, %v363
  %v400 = vpack.c.b16 %v367, %v364
  %v401 = vpack.c.b16 %v371, %v368
  %v402 = vpack.c.b16 %v372, %v369
  %v403 = vpack.c.b16 %v373, %v370
  %v404 = vpack.c.b16 %v377, %v374
  %v405 = vpack.c.b16 %v378, %v375
  %v406 = vpack.c.b16 %v379, %v376
  %v407 = vpack.c.b16 %v383, %v380
  %v408 = vpack.c.b16 %v384, %v381
  %v409 = vpack.c.b16 %v385, %v382
  %434 = vmatprep.subr.bf16.mxu0 %v408
  %435 = vmatpush1.bf16.msra.mxu0 %v407
  %436 = vmatprep.subr.bf16.mxu0 %v405
  %437 = vmatpush1.bf16.msra.mxu0 %v404
  %438 = vmatprep.subr.bf16.mxu0 %v402
  %439 = vmatpush1.bf16.msra.mxu0 %v401
  %440 = vmatprep.subr.bf16.mxu0 %v399
  %441 = vmatpush1.bf16.msra.mxu0 %v398
  %442 = vmatprep.subr.bf16.mxu0 %v396
  %443 = vmatpush1.bf16.msra.mxu0 %v395
  %444 = vmatprep.subr.bf16.mxu0 %v393
  %445 = vmatpush1.bf16.msra.mxu0 %v392
  %446 = vmatprep.subr.bf16.mxu0 %v390
  %447 = vmatpush1.bf16.msra.mxu0 %v389
  %448 = vmatprep.subr.bf16.mxu0 %v387
  %449 = vmatpush1.bf16.msra.mxu0 %v386
  %450 = vmatprep.subr.bf16.mxu0 0
  %451 = vmatpush2.bf16.msra.mxu0 0
  %452 = vmatprep.subr.bf16.mxu0 0
  %453 = vmatpush2.bf16.msra.mxu0 0
  %454 = vmatprep.subr.bf16.mxu0 0
  %455 = vmatpush2.bf16.msra.mxu0 0
  %456 = vmatprep.subr.bf16.mxu0 0
  %457 = vmatpush2.bf16.msra.mxu0 0
  %458 = vmatprep.subr.bf16.mxu0 0
  %459 = vmatpush2.bf16.msra.mxu0 0
  %460 = vmatprep.subr.bf16.mxu0 0
  %461 = vmatpush2.bf16.msra.mxu0 0
  %462 = vmatprep.subr.bf16.mxu0 0
  %463 = vmatpush2.bf16.msra.mxu0 0
  %464 = vmatprep.subr.bf16.mxu0 0
  %465 = vmatpush2.bf16.msra.mxu0 0
  %466 = vmatprep.mubr.bf16.mxu0 0
  %467 = vmatmul.mubr.bf16.gmra.mxu0 %v238
  %v468 = vpop.f32.mrf.mxu0
  %v469 = vadd.f32 0.0, %v468
  %v470 = vpop.f32.mrf.mxu0
  %v471 = vadd.f32 0.0, %v470
  %v472 = vpop.f32.mrf.mxu0
  %v473 = vadd.f32 0.0, %v472
  %v474 = vpop.f32.mrf.mxu0
  %v475 = vadd.f32 0.0, %v474
  %476 = vmatprep.mubr.bf16.mxu0 0
  %477 = vmatmul.mubr.bf16.gmra.mxu0 %v287
  %v478 = vpop.f32.mrf.mxu0
  %v479 = vadd.f32 0.0, %v478
  %v480 = vpop.f32.mrf.mxu0
  %v481 = vadd.f32 0.0, %v480
  %v482 = vpop.f32.mrf.mxu0
  %v483 = vadd.f32 0.0, %v482
  %v484 = vpop.f32.mrf.mxu0
  %v485 = vadd.f32 0.0, %v484
  %486 = vmatprep.mubr.bf16.mxu0 0
  %487 = vmatmul.mubr.bf16.gmra.mxu0 %v302
  %v488 = vpop.f32.mrf.mxu0
  %v489 = vadd.f32 0.0, %v488
  %v490 = vpop.f32.mrf.mxu0
  %v491 = vadd.f32 0.0, %v490
  %v492 = vpop.f32.mrf.mxu0
  %v493 = vpop.f32.mrf.mxu0
  %494 = vdwg.mxu0
  %495 = vmatprep.subr.bf16.mxu0 0
  %496 = vmatpush1.bf16.msra.mxu0 %v409
  %497 = vmatprep.subr.bf16.mxu0 0
  %498 = vmatpush1.bf16.msra.mxu0 %v406
  %499 = vmatprep.subr.bf16.mxu0 0
  %500 = vmatpush1.bf16.msra.mxu0 %v403
  %501 = vmatprep.subr.bf16.mxu0 0
  %502 = vmatpush1.bf16.msra.mxu0 %v400
  %503 = vmatprep.subr.bf16.mxu0 0
  %504 = vmatpush1.bf16.msra.mxu0 %v397
  %505 = vmatprep.subr.bf16.mxu0 0
  %506 = vmatpush1.bf16.msra.mxu0 %v394
  %507 = vmatprep.subr.bf16.mxu0 0
  %508 = vmatpush1.bf16.msra.mxu0 %v391
  %509 = vmatprep.subr.bf16.mxu0 0
  %510 = vmatpush1.bf16.msra.mxu0 %v388
  %511 = vmatprep.subr.bf16.mxu0 0
  %512 = vmatpush2.bf16.msra.mxu0 0
  %513 = vmatprep.subr.bf16.mxu0 0
  %514 = vmatpush2.bf16.msra.mxu0 0
  %515 = vmatprep.subr.bf16.mxu0 0
  %516 = vmatpush2.bf16.msra.mxu0 0
  %517 = vmatprep.subr.bf16.mxu0 0
  %518 = vmatpush2.bf16.msra.mxu0 0
  %519 = vmatprep.subr.bf16.mxu0 0
  %520 = vmatpush2.bf16.msra.mxu0 0
  %521 = vmatprep.subr.bf16.mxu0 0
  %522 = vmatpush2.bf16.msra.mxu0 0
  %523 = vmatprep.subr.bf16.mxu0 0
  %524 = vmatpush2.bf16.msra.mxu0 0
  %525 = vmatprep.subr.bf16.mxu0 0
  %526 = vmatpush2.bf16.msra.mxu0 0
  %527 = vmatprep.mubr.bf16.mxu0 0
  %528 = vmatmul.mubr.bf16.gmra.mxu0 %v238
  %v529 = vpop.f32.mrf.mxu0
  %v530 = vadd.f32 0.0, %v529
  %v531 = vpop.f32.mrf.mxu0
  %v532 = vpop.f32.mrf.mxu0
  %v533 = vadd.f32 0.0, %v532
  %v534 = vpop.f32.mrf.mxu0
  %535 = vmatprep.mubr.bf16.mxu0 0
  %536 = vmatmul.mubr.bf16.gmra.mxu0 %v287
  %v537 = vpop.f32.mrf.mxu0
  %v538 = vadd.f32 0.0, %v537
  %v539 = vpop.f32.mrf.mxu0
  %v540 = vpop.f32.mrf.mxu0
  %v541 = vadd.f32 0.0, %v540
  %v542 = vpop.f32.mrf.mxu0
  %543 = vmatprep.mubr.bf16.mxu0 0
  %544 = vmatmul.mubr.bf16.gmra.mxu0 %v302
  %v545 = vpop.f32.mrf.mxu0
  %v546 = vadd.f32 0.0, %v545
  %v547 = vpop.f32.mrf.mxu0
  %v548 = vpop.f32.mrf.mxu0
  %v549 = vpop.f32.mrf.mxu0
  %550 = vdwg.mxu0
  %v566 = vcombine.low %v469, %v471
  %v567 = vcombine.high %v469, %v471
  %v568 = vcombine.high %v530, %v530
  %v570 = vunpack.c.l.s4 1983009808
  %v571 = vunpack.c.0.s8 %v570
  %v572 = vlaneseq
  %v573 = vshrl.u32 %v572, 7
  %v574 = vsub.s32 %v571, %v573
  %v575 = vrot.slane %v566, %v574
  %v577 = vunpack.c.l.s4 1983009808
  %v578 = vunpack.c.0.s8 %v577
  %v579 = vlaneseq
  %v580 = vshrl.u32 %v579, 7
  %v581 = vsub.s32 %v578, %v580
  %v582 = vrot.slane %v567, %v581
  %v584 = vunpack.c.l.s4 1983009808
  %v585 = vunpack.c.0.s8 %v584
  %v586 = vlaneseq
  %v587 = vshrl.u32 %v586, 7
  %v588 = vsub.s32 %v585, %v587
  %v589 = vrot.slane %v530, %v588
  %v591 = vunpack.c.l.s4 1983009808
  %v592 = vunpack.c.0.s8 %v591
  %v593 = vlaneseq
  %v594 = vshrl.u32 %v593, 7
  %v595 = vsub.s32 %v592, %v594
  %v596 = vrot.slane %v568, %v595
  %v597 = vcombine.low %v575, %v589
  %v598 = vcombine.high %v575, %v589
  %v599 = vcombine.low %v582, %v596
  %v600 = vcombine.high %v582, %v596
  %v601 = vcombine.low %v473, %v475
  %v602 = vcombine.high %v473, %v475
  %v603 = vcombine.high %v533, %v533
  %v605 = vunpack.c.l.s4 1983009808
  %v606 = vunpack.c.0.s8 %v605
  %v607 = vlaneseq
  %v608 = vshrl.u32 %v607, 7
  %v609 = vsub.s32 %v606, %v608
  %v610 = vrot.slane %v601, %v609
  %v612 = vunpack.c.l.s4 1983009808
  %v613 = vunpack.c.0.s8 %v612
  %v614 = vlaneseq
  %v615 = vshrl.u32 %v614, 7
  %v616 = vsub.s32 %v613, %v615
  %v617 = vrot.slane %v602, %v616
  %v619 = vunpack.c.l.s4 1983009808
  %v620 = vunpack.c.0.s8 %v619
  %v621 = vlaneseq
  %v622 = vshrl.u32 %v621, 7
  %v623 = vsub.s32 %v620, %v622
  %v624 = vrot.slane %v533, %v623
  %v626 = vunpack.c.l.s4 1983009808
  %v627 = vunpack.c.0.s8 %v626
  %v628 = vlaneseq
  %v629 = vshrl.u32 %v628, 7
  %v630 = vsub.s32 %v627, %v629
  %v631 = vrot.slane %v603, %v630
  %v632 = vcombine.low %v610, %v624
  %v633 = vcombine.high %v610, %v624
  %v634 = vcombine.low %v617, %v631
  %v635 = vcombine.high %v617, %v631
  %v636 = vcombine.low %v479, %v481
  %v637 = vcombine.high %v479, %v481
  %v638 = vcombine.high %v538, %v538
  %v640 = vunpack.c.l.s4 1983009808
  %v641 = vunpack.c.0.s8 %v640
  %v642 = vlaneseq
  %v643 = vshrl.u32 %v642, 7
  %v644 = vsub.s32 %v641, %v643
  %v645 = vrot.slane %v636, %v644
  %v647 = vunpack.c.l.s4 1983009808
  %v648 = vunpack.c.0.s8 %v647
  %v649 = vlaneseq
  %v650 = vshrl.u32 %v649, 7
  %v651 = vsub.s32 %v648, %v650
  %v652 = vrot.slane %v637, %v651
  %v654 = vunpack.c.l.s4 1983009808
  %v655 = vunpack.c.0.s8 %v654
  %v656 = vlaneseq
  %v657 = vshrl.u32 %v656, 7
  %v658 = vsub.s32 %v655, %v657
  %v659 = vrot.slane %v538, %v658
  %v661 = vunpack.c.l.s4 1983009808
  %v662 = vunpack.c.0.s8 %v661
  %v663 = vlaneseq
  %v664 = vshrl.u32 %v663, 7
  %v665 = vsub.s32 %v662, %v664
  %v666 = vrot.slane %v638, %v665
  %v667 = vcombine.low %v645, %v659
  %v668 = vcombine.high %v645, %v659
  %v669 = vcombine.low %v652, %v666
  %v670 = vcombine.high %v652, %v666
  %v671 = vcombine.low %v483, %v485
  %v672 = vcombine.high %v483, %v485
  %v673 = vcombine.high %v541, %v541
  %v675 = vunpack.c.l.s4 1983009808
  %v676 = vunpack.c.0.s8 %v675
  %v677 = vlaneseq
  %v678 = vshrl.u32 %v677, 7
  %v679 = vsub.s32 %v676, %v678
  %v680 = vrot.slane %v671, %v679
  %v682 = vunpack.c.l.s4 1983009808
  %v683 = vunpack.c.0.s8 %v682
  %v684 = vlaneseq
  %v685 = vshrl.u32 %v684, 7
  %v686 = vsub.s32 %v683, %v685
  %v687 = vrot.slane %v672, %v686
  %v689 = vunpack.c.l.s4 1983009808
  %v690 = vunpack.c.0.s8 %v689
  %v691 = vlaneseq
  %v692 = vshrl.u32 %v691, 7
  %v693 = vsub.s32 %v690, %v692
  %v694 = vrot.slane %v541, %v693
  %v696 = vunpack.c.l.s4 1983009808
  %v697 = vunpack.c.0.s8 %v696
  %v698 = vlaneseq
  %v699 = vshrl.u32 %v698, 7
  %v700 = vsub.s32 %v697, %v699
  %v701 = vrot.slane %v673, %v700
  %v702 = vcombine.low %v680, %v694
  %v703 = vcombine.high %v680, %v694
  %v704 = vcombine.low %v687, %v701
  %v705 = vcombine.high %v687, %v701
  %v706 = vcombine.low %v489, %v491
  %v708 = vunpack.c.l.s4 1983009808
  %v709 = vunpack.c.0.s8 %v708
  %v710 = vlaneseq
  %v711 = vshrl.u32 %v710, 7
  %v712 = vsub.s32 %v709, %v711
  %v713 = vrot.slane %v706, %v712
  %v715 = vunpack.c.l.s4 1983009808
  %v716 = vunpack.c.0.s8 %v715
  %v717 = vlaneseq
  %v718 = vshrl.u32 %v717, 7
  %v719 = vsub.s32 %v716, %v718
  %v720 = vrot.slane %v546, %v719
  %v721 = vcombine.low %v713, %v720
  %v722 = vcombine.high %v713, %v720
  %vm739 = vcmask 1040384
  %vm740 = vcmask 1042434
  %vm741 = vmor %vm739, %vm740
  %vm742 = vcmask 1044484
  %vm743 = vmor %vm741, %vm742
  %vm744 = vcmask 1046534
  %vm745 = vmor %vm743, %vm744
  %v746 = vrot.slane %v597, 7
  %v747 = vrot.slane %v746, 2
  %v748 = vrot.slane %v598, 7
  %v749 = vsel %vm745, %v747, %v748
  %v750 = vrot.slane %v748, 2
  %v751 = vrot.slane %v599, 7
  %v752 = vsel %vm745, %v750, %v751
  %v753 = vrot.slane %v751, 2
  %v754 = vrot.slane %v600, 7
  %v755 = vsel %vm745, %v753, %v754
  %v756 = vrot.slane %v754, 2
  %v757 = vrot.slane %v632, 7
  %v758 = vsel %vm745, %v756, %v757
  %v759 = vrot.slane %v757, 2
  %v760 = vrot.slane %v633, 7
  %v761 = vsel %vm745, %v759, %v760
  %v762 = vrot.slane %v760, 2
  %v763 = vrot.slane %v634, 7
  %v764 = vsel %vm745, %v762, %v763
  %v765 = vrot.slane %v763, 2
  %v766 = vrot.slane %v635, 7
  %v767 = vsel %vm745, %v765, %v766
  %v768 = vrot.slane %v766, 2
  %v769 = vrot.slane %v667, 7
  %v770 = vsel %vm745, %v768, %v769
  %v771 = vrot.slane %v668, 7
  %v772 = vrot.slane %v771, 2
  %v773 = vrot.slane %v669, 7
  %v774 = vsel %vm745, %v772, %v773
  %v775 = vrot.slane %v773, 2
  %v776 = vrot.slane %v670, 7
  %v777 = vsel %vm745, %v775, %v776
  %v778 = vrot.slane %v776, 2
  %v779 = vrot.slane %v702, 7
  %v780 = vsel %vm745, %v778, %v779
  %v781 = vrot.slane %v779, 2
  %v782 = vrot.slane %v703, 7
  %v783 = vsel %vm745, %v781, %v782
  %v784 = vrot.slane %v782, 2
  %v785 = vrot.slane %v704, 7
  %v786 = vsel %vm745, %v784, %v785
  %v787 = vrot.slane %v785, 2
  %v788 = vrot.slane %v705, 7
  %v789 = vsel %vm745, %v787, %v788
  %v790 = vrot.slane %v788, 2
  %v791 = vrot.slane %v721, 7
  %v792 = vsel %vm745, %v790, %v791
  %v793 = vrot.slane %v791, 2
  %v794 = vrot.slane %v722, 7
  %v795 = vsel %vm745, %v793, %v794
  %v796 = vrot.slane %v749, 2
  %v797 = vrot.slane %v752, 2
  %v798 = vrot.slane %v755, 2
  %v799 = vrot.slane %v758, 2
  %v800 = vrot.slane %v761, 2
  %v801 = vrot.slane %v764, 2
  %v802 = vrot.slane %v767, 2
  %v803 = vrot.slane %v770, 2
  %v804 = vrot.slane %v774, 2
  %v805 = vrot.slane %v777, 2
  %v806 = vrot.slane %v780, 2
  %v807 = vrot.slane %v783, 2
  %v808 = vrot.slane %v786, 2
  %v809 = vrot.slane %v789, 2
  %v810 = vrot.slane %v792, 2
  %v811 = vrot.slane %v795, 2
  %v828 = vadd.f32 %v597, %v796
  %v829 = vadd.f32 %v598, %v797
  %v830 = vadd.f32 %v599, %v798
  %v831 = vadd.f32 %v600, %v799
  %v832 = vadd.f32 %v632, %v800
  %v833 = vadd.f32 %v633, %v801
  %v834 = vadd.f32 %v634, %v802
  %v835 = vadd.f32 %v635, %v803
  %v836 = vadd.f32 %v668, %v804
  %v837 = vadd.f32 %v669, %v805
  %v838 = vadd.f32 %v670, %v806
  %v839 = vadd.f32 %v702, %v807
  %v840 = vadd.f32 %v703, %v808
  %v841 = vadd.f32 %v704, %v809
  %v842 = vadd.f32 %v705, %v810
  %v843 = vadd.f32 %v721, %v811
  %v844 = vrot.slane %v598, 4
  %v845 = vrot.slane %v599, 4
  %v846 = vrot.slane %v600, 4
  %v847 = vrot.slane %v632, 4
  %v848 = vrot.slane %v633, 4
  %v849 = vrot.slane %v634, 4
  %v850 = vrot.slane %v635, 4
  %v851 = vrot.slane %v667, 4
  %v852 = vrot.slane %v669, 4
  %v853 = vrot.slane %v670, 4
  %v854 = vrot.slane %v702, 4
  %v855 = vrot.slane %v703, 4
  %v856 = vrot.slane %v704, 4
  %v857 = vrot.slane %v705, 4
  %v858 = vrot.slane %v721, 4
  %v859 = vrot.slane %v722, 4
  %v876 = vadd.f32 %v828, %v844
  %v877 = vadd.f32 %v829, %v845
  %v878 = vadd.f32 %v830, %v846
  %v879 = vadd.f32 %v831, %v847
  %v880 = vadd.f32 %v832, %v848
  %v881 = vadd.f32 %v833, %v849
  %v882 = vadd.f32 %v834, %v850
  %v883 = vadd.f32 %v835, %v851
  %v884 = vadd.f32 %v836, %v852
  %v885 = vadd.f32 %v837, %v853
  %v886 = vadd.f32 %v838, %v854
  %v887 = vadd.f32 %v839, %v855
  %v888 = vadd.f32 %v840, %v856
  %v889 = vadd.f32 %v841, %v857
  %v890 = vadd.f32 %v842, %v858
  %v891 = vadd.f32 %v843, %v859
  %v892 = vlaneseq
  %v893 = vshrl.u32 %v892, 7
  %v894 = vsub.s32 0, %v893
  %v895 = vrot.slane %v18, %v894
  %v897 = vcombine.high %v895, %v895
  %v899 = vunpack.c.l.s4 1983009808
  %v900 = vunpack.c.0.s8 %v899
  %v901 = vlaneseq
  %v902 = vshrl.u32 %v901, 7
  %v903 = vsub.s32 %v900, %v902
  %v904 = vrot.slane %v895, %v903
  %v906 = vunpack.c.l.s4 1983009808
  %v907 = vunpack.c.0.s8 %v906
  %v908 = vlaneseq
  %v909 = vshrl.u32 %v908, 7
  %v910 = vsub.s32 %v907, %v909
  %v911 = vrot.slane %v897, %v910
  %v912 = vcombine.high %v904, %v904
  %v913 = vcombine.high %v911, %v911
  %v918 = vmul.f32 %v876, %v904
  %v919 = vmul.f32 %v877, %v912
  %v920 = vmul.f32 %v878, %v911
  %v921 = vmul.f32 %v879, %v913
  %v922 = vmul.f32 %v880, %v904
  %v923 = vmul.f32 %v881, %v912
  %v924 = vmul.f32 %v882, %v911
  %v925 = vmul.f32 %v883, %v913
  %v926 = vmul.f32 %v884, %v904
  %v927 = vmul.f32 %v885, %v912
  %v928 = vmul.f32 %v886, %v911
  %v929 = vmul.f32 %v887, %v913
  %v930 = vmul.f32 %v888, %v904
  %v931 = vmul.f32 %v889, %v912
  %v932 = vmul.f32 %v890, %v911
  %v933 = vmul.f32 %v891, %v913
  %v934 = vlaneseq
  %v935 = vshrl.u32 %v934, 7
  %v936 = vsub.s32 0, %v935
  %v937 = vrot.slane %v19, %v936
  %v939 = vcombine.high %v937, %v937
  %v941 = vunpack.c.l.s4 1983009808
  %v942 = vunpack.c.0.s8 %v941
  %v943 = vlaneseq
  %v944 = vshrl.u32 %v943, 7
  %v945 = vsub.s32 %v942, %v944
  %v946 = vrot.slane %v937, %v945
  %v948 = vunpack.c.l.s4 1983009808
  %v949 = vunpack.c.0.s8 %v948
  %v950 = vlaneseq
  %v951 = vshrl.u32 %v950, 7
  %v952 = vsub.s32 %v949, %v951
  %v953 = vrot.slane %v939, %v952
  %v954 = vcombine.high %v946, %v946
  %v955 = vcombine.high %v953, %v953
  %v960 = vadd.f32 %v918, %v946
  %v961 = vadd.f32 %v919, %v954
  %v962 = vadd.f32 %v920, %v953
  %v963 = vadd.f32 %v921, %v955
  %v964 = vadd.f32 %v922, %v946
  %v965 = vadd.f32 %v923, %v954
  %v966 = vadd.f32 %v924, %v953
  %v967 = vadd.f32 %v925, %v955
  %v968 = vadd.f32 %v926, %v946
  %v969 = vadd.f32 %v927, %v954
  %v970 = vadd.f32 %v928, %v953
  %v971 = vadd.f32 %v929, %v955
  %v972 = vadd.f32 %v930, %v946
  %v973 = vadd.f32 %v931, %v954
  %v974 = vadd.f32 %v932, %v953
  %v975 = vadd.f32 %v933, %v955
  %v976 = vmax.f32 %v960, 0.0
  %v977 = vmax.f32 %v961, 0.0
  %v978 = vmax.f32 %v962, 0.0
  %v979 = vmax.f32 %v963, 0.0
  %v980 = vmax.f32 %v964, 0.0
  %v981 = vmax.f32 %v965, 0.0
  %v982 = vmax.f32 %v966, 0.0
  %v983 = vmax.f32 %v967, 0.0
  %v984 = vmax.f32 %v968, 0.0
  %v985 = vmax.f32 %v969, 0.0
  %v986 = vmax.f32 %v970, 0.0
  %v987 = vmax.f32 %v971, 0.0
  %v988 = vmax.f32 %v972, 0.0
  %v989 = vmax.f32 %v973, 0.0
  %v990 = vmax.f32 %v974, 0.0
  %v991 = vmax.f32 %v975, 0.0
  %v1008 = vcombine.low %v976, %v977
  %v1009 = vcombine.low %v978, %v979
  %v1011 = vunpack.c.l.s4 1983009808
  %v1012 = vunpack.c.0.s8 %v1011
  %v1013 = vlaneseq
  %v1014 = vshrl.u32 %v1013, 7
  %v1015 = vsub.s32 %v1012, %v1014
  %v1016 = vrot.slane %v1008, %v1015
  %v1018 = vunpack.c.l.s4 1983009808
  %v1019 = vunpack.c.0.s8 %v1018
  %v1020 = vlaneseq
  %v1021 = vshrl.u32 %v1020, 7
  %v1022 = vsub.s32 %v1019, %v1021
  %v1023 = vrot.slane %v1009, %v1022
  %v1024 = vcombine.low %v1016, %v1023
  %v1025 = vcombine.low %v980, %v981
  %v1026 = vcombine.low %v982, %v983
  %v1028 = vunpack.c.l.s4 1983009808
  %v1029 = vunpack.c.0.s8 %v1028
  %v1030 = vlaneseq
  %v1031 = vshrl.u32 %v1030, 7
  %v1032 = vsub.s32 %v1029, %v1031
  %v1033 = vrot.slane %v1025, %v1032
  %v1035 = vunpack.c.l.s4 1983009808
  %v1036 = vunpack.c.0.s8 %v1035
  %v1037 = vlaneseq
  %v1038 = vshrl.u32 %v1037, 7
  %v1039 = vsub.s32 %v1036, %v1038
  %v1040 = vrot.slane %v1026, %v1039
  %v1041 = vcombine.low %v1033, %v1040
  %v1042 = vcombine.low %v984, %v985
  %v1043 = vcombine.low %v986, %v987
  %v1045 = vunpack.c.l.s4 1983009808
  %v1046 = vunpack.c.0.s8 %v1045
  %v1047 = vlaneseq
  %v1048 = vshrl.u32 %v1047, 7
  %v1049 = vsub.s32 %v1046, %v1048
  %v1050 = vrot.slane %v1042, %v1049
  %v1052 = vunpack.c.l.s4 1983009808
  %v1053 = vunpack.c.0.s8 %v1052
  %v1054 = vlaneseq
  %v1055 = vshrl.u32 %v1054, 7
  %v1056 = vsub.s32 %v1053, %v1055
  %v1057 = vrot.slane %v1043, %v1056
  %v1058 = vcombine.low %v1050, %v1057
  %v1059 = vcombine.low %v988, %v989
  %v1060 = vcombine.low %v990, %v991
  %v1062 = vunpack.c.l.s4 1983009808
  %v1063 = vunpack.c.0.s8 %v1062
  %v1064 = vlaneseq
  %v1065 = vshrl.u32 %v1064, 7
  %v1066 = vsub.s32 %v1063, %v1065
  %v1067 = vrot.slane %v1059, %v1066
  %v1069 = vunpack.c.l.s4 1983009808
  %v1070 = vunpack.c.0.s8 %v1069
  %v1071 = vlaneseq
  %v1072 = vshrl.u32 %v1071, 7
  %v1073 = vsub.s32 %v1070, %v1072
  %v1074 = vrot.slane %v1060, %v1073
  %v1075 = vcombine.low %v1067, %v1074
  %v1080 = vpack.c.bf16 %v1041, %v1024
  %v1081 = vpack.c.bf16 %v1075, %v1058
  %v1083 = vshrl.u32 %v1080, 16
  %v1085 = vrot.slane %v1083, 7
  %v1086 = vshll.u32 %v1080, 16
  %v1088 = vor.u32 %v1085, %v1086
  %v1090 = vshrl.u32 %v1081, 16
  %v1092 = vrot.slane %v1090, 7
  %v1093 = vshll.u32 %v1081, 16
  %v1095 = vor.u32 %v1092, %v1093
  %vm1100 = vcmask 1040384
  %vm1101 = vsmask.f32 256
  %vm1102 = vmand %vm1100, %vm1101
  %v1103 = vsel %vm1102, 0, %v1088
  %v1104 = vsel %vm1102, 0, %v1095
  %v1105 = vsel %vm1102, %v1085, 0
  %v1106 = vsel %vm1102, %v1092, 0
  %v1111 = vcombine.high %v1103, %v1103
  %v1113 = vunpack.c.l.s4 1966171168
  %v1114 = vunpack.c.0.s8 %v1113
  %v1115 = vlaneseq
  %v1116 = vshrl.u32 %v1115, 7
  %v1117 = vsub.s32 %v1114, %v1116
  %v1118 = vrot.slane %v1103, %v1117
  %v1120 = vunpack.c.l.s4 1966171168
  %v1121 = vunpack.c.0.s8 %v1120
  %v1122 = vlaneseq
  %v1123 = vshrl.u32 %v1122, 7
  %v1124 = vsub.s32 %v1121, %v1123
  %v1125 = vrot.slane %v1111, %v1124
  %v1126 = vcombine.high %v1118, %v1118
  %v1127 = vcombine.high %v1125, %v1125
  %v1129 = vunpack.c.l.s4 1966171168
  %v1130 = vunpack.c.0.s8 %v1129
  %v1131 = vlaneseq
  %v1132 = vshrl.u32 %v1131, 7
  %v1133 = vsub.s32 %v1130, %v1132
  %v1134 = vrot.slane %v1118, %v1133
  %v1136 = vunpack.c.l.s4 1966171168
  %v1137 = vunpack.c.0.s8 %v1136
  %v1138 = vlaneseq
  %v1139 = vshrl.u32 %v1138, 7
  %v1140 = vsub.s32 %v1137, %v1139
  %v1141 = vrot.slane %v1125, %v1140
  %v1143 = vunpack.c.l.s4 1966171168
  %v1144 = vunpack.c.0.s8 %v1143
  %v1145 = vlaneseq
  %v1146 = vshrl.u32 %v1145, 7
  %v1147 = vsub.s32 %v1144, %v1146
  %v1148 = vrot.slane %v1126, %v1147
  %v1150 = vunpack.c.l.s4 1966171168
  %v1151 = vunpack.c.0.s8 %v1150
  %v1152 = vlaneseq
  %v1153 = vshrl.u32 %v1152, 7
  %v1154 = vsub.s32 %v1151, %v1153
  %v1155 = vrot.slane %v1127, %v1154
  %v1156 = vcombine.high %v1134, %v1134
  %v1157 = vcombine.high %v1141, %v1141
  %v1158 = vcombine.high %v1148, %v1148
  %v1159 = vcombine.high %v1155, %v1155
  %v1161 = vunpack.c.l.s4 1966171168
  %v1162 = vunpack.c.0.s8 %v1161
  %v1163 = vlaneseq
  %v1164 = vshrl.u32 %v1163, 7
  %v1165 = vsub.s32 %v1162, %v1164
  %v1166 = vrot.slane %v1105, %v1165
  %v1168 = vunpack.c.l.s4 1966171168
  %v1169 = vunpack.c.0.s8 %v1168
  %v1170 = vlaneseq
  %v1171 = vshrl.u32 %v1170, 7
  %v1172 = vsub.s32 %v1169, %v1171
  %v1173 = vrot.slane %v1166, %v1172
  %v1174 = vcombine.high %v1104, %v1104
  %v1176 = vunpack.c.l.s4 1966171168
  %v1177 = vunpack.c.0.s8 %v1176
  %v1178 = vlaneseq
  %v1179 = vshrl.u32 %v1178, 7
  %v1180 = vsub.s32 %v1177, %v1179
  %v1181 = vrot.slane %v1104, %v1180
  %v1183 = vunpack.c.l.s4 1966171168
  %v1184 = vunpack.c.0.s8 %v1183
  %v1185 = vlaneseq
  %v1186 = vshrl.u32 %v1185, 7
  %v1187 = vsub.s32 %v1184, %v1186
  %v1188 = vrot.slane %v1174, %v1187
  %v1189 = vcombine.high %v1181, %v1181
  %v1190 = vcombine.high %v1188, %v1188
  %v1192 = vunpack.c.l.s4 1966171168
  %v1193 = vunpack.c.0.s8 %v1192
  %v1194 = vlaneseq
  %v1195 = vshrl.u32 %v1194, 7
  %v1196 = vsub.s32 %v1193, %v1195
  %v1197 = vrot.slane %v1181, %v1196
  %v1199 = vunpack.c.l.s4 1966171168
  %v1200 = vunpack.c.0.s8 %v1199
  %v1201 = vlaneseq
  %v1202 = vshrl.u32 %v1201, 7
  %v1203 = vsub.s32 %v1200, %v1202
  %v1204 = vrot.slane %v1188, %v1203
  %v1206 = vunpack.c.l.s4 1966171168
  %v1207 = vunpack.c.0.s8 %v1206
  %v1208 = vlaneseq
  %v1209 = vshrl.u32 %v1208, 7
  %v1210 = vsub.s32 %v1207, %v1209
  %v1211 = vrot.slane %v1189, %v1210
  %v1213 = vunpack.c.l.s4 1966171168
  %v1214 = vunpack.c.0.s8 %v1213
  %v1215 = vlaneseq
  %v1216 = vshrl.u32 %v1215, 7
  %v1217 = vsub.s32 %v1214, %v1216
  %v1218 = vrot.slane %v1190, %v1217
  %v1219 = vcombine.high %v1197, %v1197
  %v1220 = vcombine.high %v1204, %v1204
  %v1221 = vcombine.high %v1211, %v1211
  %v1222 = vcombine.high %v1218, %v1218
  %v1224 = vunpack.c.l.s4 1966171168
  %v1225 = vunpack.c.0.s8 %v1224
  %v1226 = vlaneseq
  %v1227 = vshrl.u32 %v1226, 7
  %v1228 = vsub.s32 %v1225, %v1227
  %v1229 = vrot.slane %v1106, %v1228
  %v1231 = vunpack.c.l.s4 1966171168
  %v1232 = vunpack.c.0.s8 %v1231
  %v1233 = vlaneseq
  %v1234 = vshrl.u32 %v1233, 7
  %v1235 = vsub.s32 %v1232, %v1234
  %v1236 = vrot.slane %v1229, %v1235
  %v1237 = vld [vmem:[%s2] sm:$0xff]
  %v1238 = vld [vmem:[%s2 + $0x8] sm:$0xf]
  %v1239 = vld [vmem:[%s2 + $0xc] sm:$0xff]
  %v1240 = vld [vmem:[%s2 + $0x14] sm:$0xf]
  %v1241 = vld [vmem:[%s2 + $0x18] sm:$0xff]
  %v1242 = vld [vmem:[%s2 + $0x20] sm:$0xf]
  %v1243 = vld [vmem:[%s2 + $0x24] sm:$0xff]
  %v1244 = vld [vmem:[%s2 + $0x2c] sm:$0xf]
  %v1245 = vld [vmem:[%s2 + $0x30] sm:$0xff]
  %v1246 = vld [vmem:[%s2 + $0x38] sm:$0xf]
  %v1247 = vld [vmem:[%s2 + $0x3c] sm:$0xff]
  %v1248 = vld [vmem:[%s2 + $0x44] sm:$0xf]
  %v1249 = vld [vmem:[%s2 + $0x48] sm:$0xff]
  %v1250 = vld [vmem:[%s2 + $0x50] sm:$0xf]
  %v1251 = vld [vmem:[%s2 + $0x54] sm:$0xff]
  %v1252 = vld [vmem:[%s2 + $0x5c] sm:$0xf]
  %v1253 = vld [vmem:[%s2 + $0x60] sm:$0xff]
  %v1254 = vld [vmem:[%s2 + $0x68] sm:$0xf]
  %v1255 = vld [vmem:[%s2 + $0x6c] sm:$0xff]
  %v1256 = vld [vmem:[%s2 + $0x74] sm:$0xf]
  %v1257 = vld [vmem:[%s2 + $0x78] sm:$0xff]
  %v1258 = vld [vmem:[%s2 + $0x80] sm:$0xf]
  %v1259 = vld [vmem:[%s2 + $0x84] sm:$0xff]
  %v1260 = vld [vmem:[%s2 + $0x8c] sm:$0xf]
  %v1261 = vld [vmem:[%s2 + $0x90] sm:$0xff]
  %v1262 = vld [vmem:[%s2 + $0x98] sm:$0xf]
  %v1263 = vld [vmem:[%s2 + $0x9c] sm:$0xff]
  %v1264 = vld [vmem:[%s2 + $0xa4] sm:$0xf]
  %v1265 = vld [vmem:[%s2 + $0xa8] sm:$0xff]
  %v1266 = vld [vmem:[%s2 + $0xb0] sm:$0xf]
  %v1267 = vld [vmem:[%s2 + $0xb4] sm:$0xff]
  %v1268 = vld [vmem:[%s2 + $0xbc] sm:$0xf]
  %v1269 = vcombine.low %v1134, %v1148
  %v1270 = vcombine.low %v1156, %v1158
  %v1271 = vcombine.low %v1141, %v1155
  %v1272 = vcombine.low %v1157, %v1159
  %v1274 = vunpack.c.l.s4 1966171168
  %v1275 = vunpack.c.0.s8 %v1274
  %v1276 = vlaneseq
  %v1277 = vshrl.u32 %v1276, 7
  %v1278 = vsub.s32 %v1275, %v1277
  %v1279 = vrot.slane %v1269, %v1278
  %v1281 = vunpack.c.l.s4 1966171168
  %v1282 = vunpack.c.0.s8 %v1281
  %v1283 = vlaneseq
  %v1284 = vshrl.u32 %v1283, 7
  %v1285 = vsub.s32 %v1282, %v1284
  %v1286 = vrot.slane %v1270, %v1285
  %v1288 = vunpack.c.l.s4 1966171168
  %v1289 = vunpack.c.0.s8 %v1288
  %v1290 = vlaneseq
  %v1291 = vshrl.u32 %v1290, 7
  %v1292 = vsub.s32 %v1289, %v1291
  %v1293 = vrot.slane %v1271, %v1292
  %v1295 = vunpack.c.l.s4 1966171168
  %v1296 = vunpack.c.0.s8 %v1295
  %v1297 = vlaneseq
  %v1298 = vshrl.u32 %v1297, 7
  %v1299 = vsub.s32 %v1296, %v1298
  %v1300 = vrot.slane %v1272, %v1299
  %v1301 = vcombine.low %v1279, %v1286
  %v1302 = vcombine.low %v1293, %v1300
  %v1304 = vunpack.c.l.s4 1966171168
  %v1305 = vunpack.c.0.s8 %v1304
  %v1306 = vlaneseq
  %v1307 = vshrl.u32 %v1306, 7
  %v1308 = vsub.s32 %v1305, %v1307
  %v1309 = vrot.slane %v1301, %v1308
  %v1311 = vunpack.c.l.s4 1966171168
  %v1312 = vunpack.c.0.s8 %v1311
  %v1313 = vlaneseq
  %v1314 = vshrl.u32 %v1313, 7
  %v1315 = vsub.s32 %v1312, %v1314
  %v1316 = vrot.slane %v1302, %v1315
  %v1317 = vcombine.low %v1309, %v1316
  %v1318 = vcombine.low %v1173, %v1197
  %v1319 = vcombine.low %v1211, %v1219
  %v1320 = vcombine.low %v1221, %v1204
  %v1321 = vcombine.low %v1218, %v1220
  %v1323 = vunpack.c.l.s4 1966171168
  %v1324 = vunpack.c.0.s8 %v1323
  %v1325 = vlaneseq
  %v1326 = vshrl.u32 %v1325, 7
  %v1327 = vsub.s32 %v1324, %v1326
  %v1328 = vrot.slane %v1318, %v1327
  %v1330 = vunpack.c.l.s4 1966171168
  %v1331 = vunpack.c.0.s8 %v1330
  %v1332 = vlaneseq
  %v1333 = vshrl.u32 %v1332, 7
  %v1334 = vsub.s32 %v1331, %v1333
  %v1335 = vrot.slane %v1319, %v1334
  %v1337 = vunpack.c.l.s4 1966171168
  %v1338 = vunpack.c.0.s8 %v1337
  %v1339 = vlaneseq
  %v1340 = vshrl.u32 %v1339, 7
  %v1341 = vsub.s32 %v1338, %v1340
  %v1342 = vrot.slane %v1320, %v1341
  %v1344 = vunpack.c.l.s4 1966171168
  %v1345 = vunpack.c.0.s8 %v1344
  %v1346 = vlaneseq
  %v1347 = vshrl.u32 %v1346, 7
  %v1348 = vsub.s32 %v1345, %v1347
  %v1349 = vrot.slane %v1321, %v1348
  %v1350 = vcombine.low %v1328, %v1335
  %v1351 = vcombine.low %v1342, %v1349
  %v1353 = vunpack.c.l.s4 1966171168
  %v1354 = vunpack.c.0.s8 %v1353
  %v1355 = vlaneseq
  %v1356 = vshrl.u32 %v1355, 7
  %v1357 = vsub.s32 %v1354, %v1356
  %v1358 = vrot.slane %v1350, %v1357
  %v1360 = vunpack.c.l.s4 1966171168
  %v1361 = vunpack.c.0.s8 %v1360
  %v1362 = vlaneseq
  %v1363 = vshrl.u32 %v1362, 7
  %v1364 = vsub.s32 %v1361, %v1363
  %v1365 = vrot.slane %v1351, %v1364
  %v1366 = vcombine.low %v1358, %v1365
  %v1367 = vcombine.low %v1222, %v1236
  %v1369 = vunpack.c.l.s4 1966171168
  %v1370 = vunpack.c.0.s8 %v1369
  %v1371 = vlaneseq
  %v1372 = vshrl.u32 %v1371, 7
  %v1373 = vsub.s32 %v1370, %v1372
  %v1374 = vrot.slane %v1367, %v1373
  %v1376 = vunpack.c.l.s4 1966171168
  %v1377 = vunpack.c.0.s8 %v1376
  %v1378 = vlaneseq
  %v1379 = vshrl.u32 %v1378, 7
  %v1380 = vsub.s32 %v1377, %v1379
  %v1381 = vrot.slane %v1374, %v1380
  %v1417 = vunpack.c.l.b16 %v1237
  %v1418 = vunpack.c.h.b16 %v1237
  %v1419 = vunpack.c.l.b16 %v1238
  %v1420 = vunpack.c.l.b16 %v1239
  %v1421 = vunpack.c.h.b16 %v1239
  %v1422 = vunpack.c.l.b16 %v1240
  %v1423 = vunpack.c.l.b16 %v1241
  %v1424 = vunpack.c.h.b16 %v1241
  %v1425 = vunpack.c.l.b16 %v1242
  %v1426 = vunpack.c.l.b16 %v1243
  %v1427 = vunpack.c.h.b16 %v1243
  %v1428 = vunpack.c.l.b16 %v1244
  %v1429 = vunpack.c.l.b16 %v1245
  %v1430 = vunpack.c.h.b16 %v1245
  %v1431 = vunpack.c.l.b16 %v1246
  %v1432 = vunpack.c.l.b16 %v1247
  %v1433 = vunpack.c.h.b16 %v1247
  %v1434 = vunpack.c.l.b16 %v1248
  %v1435 = vunpack.c.l.b16 %v1249
  %v1436 = vunpack.c.h.b16 %v1249
  %v1437 = vunpack.c.l.b16 %v1250
  %v1438 = vunpack.c.l.b16 %v1251
  %v1439 = vunpack.c.h.b16 %v1251
  %v1440 = vunpack.c.l.b16 %v1252
  %v1441 = vunpack.c.l.b16 %v1253
  %v1442 = vunpack.c.h.b16 %v1253
  %v1443 = vunpack.c.l.b16 %v1254
  %v1444 = vunpack.c.l.b16 %v1255
  %v1445 = vunpack.c.h.b16 %v1255
  %v1446 = vunpack.c.l.b16 %v1256
  %v1447 = vunpack.c.l.b16 %v1257
  %v1448 = vunpack.c.h.b16 %v1257
  %v1449 = vunpack.c.l.b16 %v1258
  %v1450 = vunpack.c.l.b16 %v1259
  %v1451 = vunpack.c.h.b16 %v1259
  %v1452 = vunpack.c.l.b16 %v1260
  %v1453 = vunpack.c.l.b16 %v1261
  %v1454 = vunpack.c.h.b16 %v1261
  %v1455 = vunpack.c.l.b16 %v1262
  %v1456 = vunpack.c.l.b16 %v1263
  %v1457 = vunpack.c.h.b16 %v1263
  %v1458 = vunpack.c.l.b16 %v1264
  %v1459 = vunpack.c.l.b16 %v1265
  %v1460 = vunpack.c.h.b16 %v1265
  %v1461 = vunpack.c.l.b16 %v1266
  %v1462 = vunpack.c.l.b16 %v1267
  %v1463 = vunpack.c.h.b16 %v1267
  %v1464 = vunpack.c.l.b16 %v1268
  %v1465 = vpack.c.b16 %v1420, %v1417
  %v1466 = vpack.c.b16 %v1421, %v1418
  %v1467 = vpack.c.b16 %v1422, %v1419
  %v1468 = vpack.c.b16 %v1426, %v1423
  %v1469 = vpack.c.b16 %v1427, %v1424
  %v1470 = vpack.c.b16 %v1428, %v1425
  %v1471 = vpack.c.b16 %v1432, %v1429
  %v1472 = vpack.c.b16 %v1433, %v1430
  %v1473 = vpack.c.b16 %v1434, %v1431
  %v1474 = vpack.c.b16 %v1438, %v1435
  %v1475 = vpack.c.b16 %v1439, %v1436
  %v1476 = vpack.c.b16 %v1440, %v1437
  %v1477 = vpack.c.b16 %v1444, %v1441
  %v1478 = vpack.c.b16 %v1445, %v1442
  %v1479 = vpack.c.b16 %v1446, %v1443
  %v1480 = vpack.c.b16 %v1450, %v1447
  %v1481 = vpack.c.b16 %v1451, %v1448
  %v1482 = vpack.c.b16 %v1452, %v1449
  %v1483 = vpack.c.b16 %v1456, %v1453
  %v1484 = vpack.c.b16 %v1457, %v1454
  %v1485 = vpack.c.b16 %v1458, %v1455
  %v1486 = vpack.c.b16 %v1462, %v1459
  %v1487 = vpack.c.b16 %v1463, %v1460
  %v1488 = vpack.c.b16 %v1464, %v1461
  %1513 = vmatprep.subr.bf16.mxu0 %v1487
  %1514 = vmatpush1.bf16.msra.mxu0 %v1486
  %1515 = vmatprep.subr.bf16.mxu0 %v1484
  %1516 = vmatpush1.bf16.msra.mxu0 %v1483
  %1517 = vmatprep.subr.bf16.mxu0 %v1481
  %1518 = vmatpush1.bf16.msra.mxu0 %v1480
  %1519 = vmatprep.subr.bf16.mxu0 %v1478
  %1520 = vmatpush1.bf16.msra.mxu0 %v1477
  %1521 = vmatprep.subr.bf16.mxu0 %v1475
  %1522 = vmatpush1.bf16.msra.mxu0 %v1474
  %1523 = vmatprep.subr.bf16.mxu0 %v1472
  %1524 = vmatpush1.bf16.msra.mxu0 %v1471
  %1525 = vmatprep.subr.bf16.mxu0 %v1469
  %1526 = vmatpush1.bf16.msra.mxu0 %v1468
  %1527 = vmatprep.subr.bf16.mxu0 %v1466
  %1528 = vmatpush1.bf16.msra.mxu0 %v1465
  %1529 = vmatprep.subr.bf16.mxu0 0
  %1530 = vmatpush2.bf16.msra.mxu0 0
  %1531 = vmatprep.subr.bf16.mxu0 0
  %1532 = vmatpush2.bf16.msra.mxu0 0
  %1533 = vmatprep.subr.bf16.mxu0 0
  %1534 = vmatpush2.bf16.msra.mxu0 0
  %1535 = vmatprep.subr.bf16.mxu0 0
  %1536 = vmatpush2.bf16.msra.mxu0 0
  %1537 = vmatprep.subr.bf16.mxu0 0
  %1538 = vmatpush2.bf16.msra.mxu0 0
  %1539 = vmatprep.subr.bf16.mxu0 0
  %1540 = vmatpush2.bf16.msra.mxu0 0
  %1541 = vmatprep.subr.bf16.mxu0 0
  %1542 = vmatpush2.bf16.msra.mxu0 0
  %1543 = vmatprep.subr.bf16.mxu0 0
  %1544 = vmatpush2.bf16.msra.mxu0 0
  %1545 = vmatprep.mubr.bf16.mxu0 0
  %1546 = vmatmul.mubr.bf16.gmra.mxu0 %v1317
  %v1547 = vpop.f32.mrf.mxu0
  %v1548 = vadd.f32 0.0, %v1547
  %v1549 = vpop.f32.mrf.mxu0
  %v1550 = vadd.f32 0.0, %v1549
  %v1551 = vpop.f32.mrf.mxu0
  %v1552 = vadd.f32 0.0, %v1551
  %v1553 = vpop.f32.mrf.mxu0
  %v1554 = vadd.f32 0.0, %v1553
  %1555 = vmatprep.mubr.bf16.mxu0 0
  %1556 = vmatmul.mubr.bf16.gmra.mxu0 %v1366
  %v1557 = vpop.f32.mrf.mxu0
  %v1558 = vadd.f32 0.0, %v1557
  %v1559 = vpop.f32.mrf.mxu0
  %v1560 = vadd.f32 0.0, %v1559
  %v1561 = vpop.f32.mrf.mxu0
  %v1562 = vadd.f32 0.0, %v1561
  %v1563 = vpop.f32.mrf.mxu0
  %v1564 = vadd.f32 0.0, %v1563
  %1565 = vmatprep.mubr.bf16.mxu0 0
  %1566 = vmatmul.mubr.bf16.gmra.mxu0 %v1381
  %v1567 = vpop.f32.mrf.mxu0
  %v1568 = vadd.f32 0.0, %v1567
  %v1569 = vpop.f32.mrf.mxu0
  %v1570 = vadd.f32 0.0, %v1569
  %v1571 = vpop.f32.mrf.mxu0
  %v1572 = vpop.f32.mrf.mxu0
  %1573 = vdwg.mxu0
  %1574 = vmatprep.subr.bf16.mxu0 0
  %1575 = vmatpush1.bf16.msra.mxu0 %v1488
  %1576 = vmatprep.subr.bf16.mxu0 0
  %1577 = vmatpush1.bf16.msra.mxu0 %v1485
  %1578 = vmatprep.subr.bf16.mxu0 0
  %1579 = vmatpush1.bf16.msra.mxu0 %v1482
  %1580 = vmatprep.subr.bf16.mxu0 0
  %1581 = vmatpush1.bf16.msra.mxu0 %v1479
  %1582 = vmatprep.subr.bf16.mxu0 0
  %1583 = vmatpush1.bf16.msra.mxu0 %v1476
  %1584 = vmatprep.subr.bf16.mxu0 0
  %1585 = vmatpush1.bf16.msra.mxu0 %v1473
  %1586 = vmatprep.subr.bf16.mxu0 0
  %1587 = vmatpush1.bf16.msra.mxu0 %v1470
  %1588 = vmatprep.subr.bf16.mxu0 0
  %1589 = vmatpush1.bf16.msra.mxu0 %v1467
  %1590 = vmatprep.subr.bf16.mxu0 0
  %1591 = vmatpush2.bf16.msra.mxu0 0
  %1592 = vmatprep.subr.bf16.mxu0 0
  %1593 = vmatpush2.bf16.msra.mxu0 0
  %1594 = vmatprep.subr.bf16.mxu0 0
  %1595 = vmatpush2.bf16.msra.mxu0 0
  %1596 = vmatprep.subr.bf16.mxu0 0
  %1597 = vmatpush2.bf16.msra.mxu0 0
  %1598 = vmatprep.subr.bf16.mxu0 0
  %1599 = vmatpush2.bf16.msra.mxu0 0
  %1600 = vmatprep.subr.bf16.mxu0 0
  %1601 = vmatpush2.bf16.msra.mxu0 0
  %1602 = vmatprep.subr.bf16.mxu0 0
  %1603 = vmatpush2.bf16.msra.mxu0 0
  %1604 = vmatprep.subr.bf16.mxu0 0
  %1605 = vmatpush2.bf16.msra.mxu0 0
  %1606 = vmatprep.mubr.bf16.mxu0 0
  %1607 = vmatmul.mubr.bf16.gmra.mxu0 %v1317
  %v1608 = vpop.f32.mrf.mxu0
  %v1609 = vadd.f32 0.0, %v1608
  %v1610 = vpop.f32.mrf.mxu0
  %v1611 = vpop.f32.mrf.mxu0
  %v1612 = vadd.f32 0.0, %v1611
  %v1613 = vpop.f32.mrf.mxu0
  %1614 = vmatprep.mubr.bf16.mxu0 0
  %1615 = vmatmul.mubr.bf16.gmra.mxu0 %v1366
  %v1616 = vpop.f32.mrf.mxu0
  %v1617 = vadd.f32 0.0, %v1616
  %v1618 = vpop.f32.mrf.mxu0
  %v1619 = vpop.f32.mrf.mxu0
  %v1620 = vadd.f32 0.0, %v1619
  %v1621 = vpop.f32.mrf.mxu0
  %1622 = vmatprep.mubr.bf16.mxu0 0
  %1623 = vmatmul.mubr.bf16.gmra.mxu0 %v1381
  %v1624 = vpop.f32.mrf.mxu0
  %v1625 = vadd.f32 0.0, %v1624
  %v1626 = vpop.f32.mrf.mxu0
  %v1627 = vpop.f32.mrf.mxu0
  %v1628 = vpop.f32.mrf.mxu0
  %1629 = vdwg.mxu0
  %v1645 = vcombine.low %v1548, %v1550
  %v1646 = vcombine.high %v1548, %v1550
  %v1647 = vcombine.high %v1609, %v1609
  %v1649 = vunpack.c.l.s4 1983009808
  %v1650 = vunpack.c.0.s8 %v1649
  %v1651 = vlaneseq
  %v1652 = vshrl.u32 %v1651, 7
  %v1653 = vsub.s32 %v1650, %v1652
  %v1654 = vrot.slane %v1645, %v1653
  %v1656 = vunpack.c.l.s4 1983009808
  %v1657 = vunpack.c.0.s8 %v1656
  %v1658 = vlaneseq
  %v1659 = vshrl.u32 %v1658, 7
  %v1660 = vsub.s32 %v1657, %v1659
  %v1661 = vrot.slane %v1646, %v1660
  %v1663 = vunpack.c.l.s4 1983009808
  %v1664 = vunpack.c.0.s8 %v1663
  %v1665 = vlaneseq
  %v1666 = vshrl.u32 %v1665, 7
  %v1667 = vsub.s32 %v1664, %v1666
  %v1668 = vrot.slane %v1609, %v1667
  %v1670 = vunpack.c.l.s4 1983009808
  %v1671 = vunpack.c.0.s8 %v1670
  %v1672 = vlaneseq
  %v1673 = vshrl.u32 %v1672, 7
  %v1674 = vsub.s32 %v1671, %v1673
  %v1675 = vrot.slane %v1647, %v1674
  %v1676 = vcombine.low %v1654, %v1668
  %v1677 = vcombine.high %v1654, %v1668
  %v1678 = vcombine.low %v1661, %v1675
  %v1679 = vcombine.high %v1661, %v1675
  %v1680 = vcombine.low %v1552, %v1554
  %v1681 = vcombine.high %v1552, %v1554
  %v1682 = vcombine.high %v1612, %v1612
  %v1684 = vunpack.c.l.s4 1983009808
  %v1685 = vunpack.c.0.s8 %v1684
  %v1686 = vlaneseq
  %v1687 = vshrl.u32 %v1686, 7
  %v1688 = vsub.s32 %v1685, %v1687
  %v1689 = vrot.slane %v1680, %v1688
  %v1691 = vunpack.c.l.s4 1983009808
  %v1692 = vunpack.c.0.s8 %v1691
  %v1693 = vlaneseq
  %v1694 = vshrl.u32 %v1693, 7
  %v1695 = vsub.s32 %v1692, %v1694
  %v1696 = vrot.slane %v1681, %v1695
  %v1698 = vunpack.c.l.s4 1983009808
  %v1699 = vunpack.c.0.s8 %v1698
  %v1700 = vlaneseq
  %v1701 = vshrl.u32 %v1700, 7
  %v1702 = vsub.s32 %v1699, %v1701
  %v1703 = vrot.slane %v1612, %v1702
  %v1705 = vunpack.c.l.s4 1983009808
  %v1706 = vunpack.c.0.s8 %v1705
  %v1707 = vlaneseq
  %v1708 = vshrl.u32 %v1707, 7
  %v1709 = vsub.s32 %v1706, %v1708
  %v1710 = vrot.slane %v1682, %v1709
  %v1711 = vcombine.low %v1689, %v1703
  %v1712 = vcombine.high %v1689, %v1703
  %v1713 = vcombine.low %v1696, %v1710
  %v1714 = vcombine.high %v1696, %v1710
  %v1715 = vcombine.low %v1558, %v1560
  %v1716 = vcombine.high %v1558, %v1560
  %v1717 = vcombine.high %v1617, %v1617
  %v1719 = vunpack.c.l.s4 1983009808
  %v1720 = vunpack.c.0.s8 %v1719
  %v1721 = vlaneseq
  %v1722 = vshrl.u32 %v1721, 7
  %v1723 = vsub.s32 %v1720, %v1722
  %v1724 = vrot.slane %v1715, %v1723
  %v1726 = vunpack.c.l.s4 1983009808
  %v1727 = vunpack.c.0.s8 %v1726
  %v1728 = vlaneseq
  %v1729 = vshrl.u32 %v1728, 7
  %v1730 = vsub.s32 %v1727, %v1729
  %v1731 = vrot.slane %v1716, %v1730
  %v1733 = vunpack.c.l.s4 1983009808
  %v1734 = vunpack.c.0.s8 %v1733
  %v1735 = vlaneseq
  %v1736 = vshrl.u32 %v1735, 7
  %v1737 = vsub.s32 %v1734, %v1736
  %v1738 = vrot.slane %v1617, %v1737
  %v1740 = vunpack.c.l.s4 1983009808
  %v1741 = vunpack.c.0.s8 %v1740
  %v1742 = vlaneseq
  %v1743 = vshrl.u32 %v1742, 7
  %v1744 = vsub.s32 %v1741, %v1743
  %v1745 = vrot.slane %v1717, %v1744
  %v1746 = vcombine.low %v1724, %v1738
  %v1747 = vcombine.high %v1724, %v1738
  %v1748 = vcombine.low %v1731, %v1745
  %v1749 = vcombine.high %v1731, %v1745
  %v1750 = vcombine.low %v1562, %v1564
  %v1751 = vcombine.high %v1562, %v1564
  %v1752 = vcombine.high %v1620, %v1620
  %v1754 = vunpack.c.l.s4 1983009808
  %v1755 = vunpack.c.0.s8 %v1754
  %v1756 = vlaneseq
  %v1757 = vshrl.u32 %v1756, 7
  %v1758 = vsub.s32 %v1755, %v1757
  %v1759 = vrot.slane %v1750, %v1758
  %v1761 = vunpack.c.l.s4 1983009808
  %v1762 = vunpack.c.0.s8 %v1761
  %v1763 = vlaneseq
  %v1764 = vshrl.u32 %v1763, 7
  %v1765 = vsub.s32 %v1762, %v1764
  %v1766 = vrot.slane %v1751, %v1765
  %v1768 = vunpack.c.l.s4 1983009808
  %v1769 = vunpack.c.0.s8 %v1768
  %v1770 = vlaneseq
  %v1771 = vshrl.u32 %v1770, 7
  %v1772 = vsub.s32 %v1769, %v1771
  %v1773 = vrot.slane %v1620, %v1772
  %v1775 = vunpack.c.l.s4 1983009808
  %v1776 = vunpack.c.0.s8 %v1775
  %v1777 = vlaneseq
  %v1778 = vshrl.u32 %v1777, 7
  %v1779 = vsub.s32 %v1776, %v1778
  %v1780 = vrot.slane %v1752, %v1779
  %v1781 = vcombine.low %v1759, %v1773
  %v1782 = vcombine.high %v1759, %v1773
  %v1783 = vcombine.low %v1766, %v1780
  %v1784 = vcombine.high %v1766, %v1780
  %v1785 = vcombine.low %v1568, %v1570
  %v1787 = vunpack.c.l.s4 1983009808
  %v1788 = vunpack.c.0.s8 %v1787
  %v1789 = vlaneseq
  %v1790 = vshrl.u32 %v1789, 7
  %v1791 = vsub.s32 %v1788, %v1790
  %v1792 = vrot.slane %v1785, %v1791
  %v1794 = vunpack.c.l.s4 1983009808
  %v1795 = vunpack.c.0.s8 %v1794
  %v1796 = vlaneseq
  %v1797 = vshrl.u32 %v1796, 7
  %v1798 = vsub.s32 %v1795, %v1797
  %v1799 = vrot.slane %v1625, %v1798
  %v1800 = vcombine.low %v1792, %v1799
  %v1801 = vcombine.high %v1792, %v1799
  %v1818 = vrot.slane %v1676, 7
  %v1819 = vrot.slane %v1818, 2
  %v1820 = vrot.slane %v1677, 7
  %v1821 = vsel %vm745, %v1819, %v1820
  %v1822 = vrot.slane %v1820, 2
  %v1823 = vrot.slane %v1678, 7
  %v1824 = vsel %vm745, %v1822, %v1823
  %v1825 = vrot.slane %v1823, 2
  %v1826 = vrot.slane %v1679, 7
  %v1827 = vsel %vm745, %v1825, %v1826
  %v1828 = vrot.slane %v1826, 2
  %v1829 = vrot.slane %v1711, 7
  %v1830 = vsel %vm745, %v1828, %v1829
  %v1831 = vrot.slane %v1829, 2
  %v1832 = vrot.slane %v1712, 7
  %v1833 = vsel %vm745, %v1831, %v1832
  %v1834 = vrot.slane %v1832, 2
  %v1835 = vrot.slane %v1713, 7
  %v1836 = vsel %vm745, %v1834, %v1835
  %v1837 = vrot.slane %v1835, 2
  %v1838 = vrot.slane %v1714, 7
  %v1839 = vsel %vm745, %v1837, %v1838
  %v1840 = vrot.slane %v1838, 2
  %v1841 = vrot.slane %v1746, 7
  %v1842 = vsel %vm745, %v1840, %v1841
  %v1843 = vrot.slane %v1747, 7
  %v1844 = vrot.slane %v1843, 2
  %v1845 = vrot.slane %v1748, 7
  %v1846 = vsel %vm745, %v1844, %v1845
  %v1847 = vrot.slane %v1845, 2
  %v1848 = vrot.slane %v1749, 7
  %v1849 = vsel %vm745, %v1847, %v1848
  %v1850 = vrot.slane %v1848, 2
  %v1851 = vrot.slane %v1781, 7
  %v1852 = vsel %vm745, %v1850, %v1851
  %v1853 = vrot.slane %v1851, 2
  %v1854 = vrot.slane %v1782, 7
  %v1855 = vsel %vm745, %v1853, %v1854
  %v1856 = vrot.slane %v1854, 2
  %v1857 = vrot.slane %v1783, 7
  %v1858 = vsel %vm745, %v1856, %v1857
  %v1859 = vrot.slane %v1857, 2
  %v1860 = vrot.slane %v1784, 7
  %v1861 = vsel %vm745, %v1859, %v1860
  %v1862 = vrot.slane %v1860, 2
  %v1863 = vrot.slane %v1800, 7
  %v1864 = vsel %vm745, %v1862, %v1863
  %v1865 = vrot.slane %v1863, 2
  %v1866 = vrot.slane %v1801, 7
  %v1867 = vsel %vm745, %v1865, %v1866
  %v1868 = vrot.slane %v1821, 2
  %v1869 = vrot.slane %v1824, 2
  %v1870 = vrot.slane %v1827, 2
  %v1871 = vrot.slane %v1830, 2
  %v1872 = vrot.slane %v1833, 2
  %v1873 = vrot.slane %v1836, 2
  %v1874 = vrot.slane %v1839, 2
  %v1875 = vrot.slane %v1842, 2
  %v1876 = vrot.slane %v1846, 2
  %v1877 = vrot.slane %v1849, 2
  %v1878 = vrot.slane %v1852, 2
  %v1879 = vrot.slane %v1855, 2
  %v1880 = vrot.slane %v1858, 2
  %v1881 = vrot.slane %v1861, 2
  %v1882 = vrot.slane %v1864, 2
  %v1883 = vrot.slane %v1867, 2
  %v1900 = vadd.f32 %v1676, %v1868
  %v1901 = vadd.f32 %v1677, %v1869
  %v1902 = vadd.f32 %v1678, %v1870
  %v1903 = vadd.f32 %v1679, %v1871
  %v1904 = vadd.f32 %v1711, %v1872
  %v1905 = vadd.f32 %v1712, %v1873
  %v1906 = vadd.f32 %v1713, %v1874
  %v1907 = vadd.f32 %v1714, %v1875
  %v1908 = vadd.f32 %v1747, %v1876
  %v1909 = vadd.f32 %v1748, %v1877
  %v1910 = vadd.f32 %v1749, %v1878
  %v1911 = vadd.f32 %v1781, %v1879
  %v1912 = vadd.f32 %v1782, %v1880
  %v1913 = vadd.f32 %v1783, %v1881
  %v1914 = vadd.f32 %v1784, %v1882
  %v1915 = vadd.f32 %v1800, %v1883
  %v1916 = vrot.slane %v1677, 4
  %v1917 = vrot.slane %v1678, 4
  %v1918 = vrot.slane %v1679, 4
  %v1919 = vrot.slane %v1711, 4
  %v1920 = vrot.slane %v1712, 4
  %v1921 = vrot.slane %v1713, 4
  %v1922 = vrot.slane %v1714, 4
  %v1923 = vrot.slane %v1746, 4
  %v1924 = vrot.slane %v1748, 4
  %v1925 = vrot.slane %v1749, 4
  %v1926 = vrot.slane %v1781, 4
  %v1927 = vrot.slane %v1782, 4
  %v1928 = vrot.slane %v1783, 4
  %v1929 = vrot.slane %v1784, 4
  %v1930 = vrot.slane %v1800, 4
  %v1931 = vrot.slane %v1801, 4
  %v1948 = vadd.f32 %v1900, %v1916
  %v1949 = vadd.f32 %v1901, %v1917
  %v1950 = vadd.f32 %v1902, %v1918
  %v1951 = vadd.f32 %v1903, %v1919
  %v1952 = vadd.f32 %v1904, %v1920
  %v1953 = vadd.f32 %v1905, %v1921
  %v1954 = vadd.f32 %v1906, %v1922
  %v1955 = vadd.f32 %v1907, %v1923
  %v1956 = vadd.f32 %v1908, %v1924
  %v1957 = vadd.f32 %v1909, %v1925
  %v1958 = vadd.f32 %v1910, %v1926
  %v1959 = vadd.f32 %v1911, %v1927
  %v1960 = vadd.f32 %v1912, %v1928
  %v1961 = vadd.f32 %v1913, %v1929
  %v1962 = vadd.f32 %v1914, %v1930
  %v1963 = vadd.f32 %v1915, %v1931
  %v1964 = vlaneseq
  %v1965 = vshrl.u32 %v1964, 7
  %v1966 = vsub.s32 0, %v1965
  %v1967 = vrot.slane %v20, %v1966
  %v1969 = vcombine.high %v1967, %v1967
  %v1971 = vunpack.c.l.s4 1983009808
  %v1972 = vunpack.c.0.s8 %v1971
  %v1973 = vlaneseq
  %v1974 = vshrl.u32 %v1973, 7
  %v1975 = vsub.s32 %v1972, %v1974
  %v1976 = vrot.slane %v1967, %v1975
  %v1978 = vunpack.c.l.s4 1983009808
  %v1979 = vunpack.c.0.s8 %v1978
  %v1980 = vlaneseq
  %v1981 = vshrl.u32 %v1980, 7
  %v1982 = vsub.s32 %v1979, %v1981
  %v1983 = vrot.slane %v1969, %v1982
  %v1984 = vcombine.high %v1976, %v1976
  %v1985 = vcombine.high %v1983, %v1983
  %v1990 = vmul.f32 %v1948, %v1976
  %v1991 = vmul.f32 %v1949, %v1984
  %v1992 = vmul.f32 %v1950, %v1983
  %v1993 = vmul.f32 %v1951, %v1985
  %v1994 = vmul.f32 %v1952, %v1976
  %v1995 = vmul.f32 %v1953, %v1984
  %v1996 = vmul.f32 %v1954, %v1983
  %v1997 = vmul.f32 %v1955, %v1985
  %v1998 = vmul.f32 %v1956, %v1976
  %v1999 = vmul.f32 %v1957, %v1984
  %v2000 = vmul.f32 %v1958, %v1983
  %v2001 = vmul.f32 %v1959, %v1985
  %v2002 = vmul.f32 %v1960, %v1976
  %v2003 = vmul.f32 %v1961, %v1984
  %v2004 = vmul.f32 %v1962, %v1983
  %v2005 = vmul.f32 %v1963, %v1985
  %v2006 = vlaneseq
  %v2007 = vshrl.u32 %v2006, 7
  %v2008 = vsub.s32 0, %v2007
  %v2009 = vrot.slane %v21, %v2008
  %v2011 = vcombine.high %v2009, %v2009
  %v2013 = vunpack.c.l.s4 1983009808
  %v2014 = vunpack.c.0.s8 %v2013
  %v2015 = vlaneseq
  %v2016 = vshrl.u32 %v2015, 7
  %v2017 = vsub.s32 %v2014, %v2016
  %v2018 = vrot.slane %v2009, %v2017
  %v2020 = vunpack.c.l.s4 1983009808
  %v2021 = vunpack.c.0.s8 %v2020
  %v2022 = vlaneseq
  %v2023 = vshrl.u32 %v2022, 7
  %v2024 = vsub.s32 %v2021, %v2023
  %v2025 = vrot.slane %v2011, %v2024
  %v2026 = vcombine.high %v2018, %v2018
  %v2027 = vcombine.high %v2025, %v2025
  %v2032 = vadd.f32 %v1990, %v2018
  %v2033 = vadd.f32 %v1991, %v2026
  %v2034 = vadd.f32 %v1992, %v2025
  %v2035 = vadd.f32 %v1993, %v2027
  %v2036 = vadd.f32 %v1994, %v2018
  %v2037 = vadd.f32 %v1995, %v2026
  %v2038 = vadd.f32 %v1996, %v2025
  %v2039 = vadd.f32 %v1997, %v2027
  %v2040 = vadd.f32 %v1998, %v2018
  %v2041 = vadd.f32 %v1999, %v2026
  %v2042 = vadd.f32 %v2000, %v2025
  %v2043 = vadd.f32 %v2001, %v2027
  %v2044 = vadd.f32 %v2002, %v2018
  %v2045 = vadd.f32 %v2003, %v2026
  %v2046 = vadd.f32 %v2004, %v2025
  %v2047 = vadd.f32 %v2005, %v2027
  %v2048 = vmax.f32 %v2032, 0.0
  %v2049 = vmax.f32 %v2033, 0.0
  %v2050 = vmax.f32 %v2034, 0.0
  %v2051 = vmax.f32 %v2035, 0.0
  %v2052 = vmax.f32 %v2036, 0.0
  %v2053 = vmax.f32 %v2037, 0.0
  %v2054 = vmax.f32 %v2038, 0.0
  %v2055 = vmax.f32 %v2039, 0.0
  %v2056 = vmax.f32 %v2040, 0.0
  %v2057 = vmax.f32 %v2041, 0.0
  %v2058 = vmax.f32 %v2042, 0.0
  %v2059 = vmax.f32 %v2043, 0.0
  %v2060 = vmax.f32 %v2044, 0.0
  %v2061 = vmax.f32 %v2045, 0.0
  %v2062 = vmax.f32 %v2046, 0.0
  %v2063 = vmax.f32 %v2047, 0.0
  %v2080 = vrot.slane %v2048, 7
  %v2081 = vrot.slane %v2080, 2
  %v2082 = vrot.slane %v2049, 7
  %v2083 = vsel %vm745, %v2081, %v2082
  %v2084 = vrot.slane %v2082, 2
  %v2085 = vrot.slane %v2050, 7
  %v2086 = vsel %vm745, %v2084, %v2085
  %v2087 = vrot.slane %v2085, 2
  %v2088 = vrot.slane %v2051, 7
  %v2089 = vsel %vm745, %v2087, %v2088
  %v2090 = vrot.slane %v2088, 2
  %v2091 = vrot.slane %v2052, 7
  %v2092 = vsel %vm745, %v2090, %v2091
  %v2093 = vrot.slane %v2091, 2
  %v2094 = vrot.slane %v2053, 7
  %v2095 = vsel %vm745, %v2093, %v2094
  %v2096 = vrot.slane %v2094, 2
  %v2097 = vrot.slane %v2054, 7
  %v2098 = vsel %vm745, %v2096, %v2097
  %v2099 = vrot.slane %v2097, 2
  %v2100 = vrot.slane %v2055, 7
  %v2101 = vsel %vm745, %v2099, %v2100
  %v2102 = vrot.slane %v2100, 2
  %v2103 = vrot.slane %v2056, 7
  %v2104 = vrot.slane %v2103, 2
  %v2105 = vrot.slane %v2057, 7
  %v2106 = vsel %vm745, %v2104, %v2105
  %v2107 = vrot.slane %v2105, 2
  %v2108 = vrot.slane %v2058, 7
  %v2109 = vsel %vm745, %v2107, %v2108
  %v2110 = vrot.slane %v2108, 2
  %v2111 = vrot.slane %v2059, 7
  %v2112 = vsel %vm745, %v2110, %v2111
  %v2113 = vrot.slane %v2111, 2
  %v2114 = vrot.slane %v2060, 7
  %v2115 = vsel %vm745, %v2113, %v2114
  %v2116 = vrot.slane %v2114, 2
  %v2117 = vrot.slane %v2061, 7
  %v2118 = vsel %vm745, %v2116, %v2117
  %v2119 = vrot.slane %v2117, 2
  %v2120 = vrot.slane %v2062, 7
  %v2121 = vsel %vm745, %v2119, %v2120
  %v2122 = vrot.slane %v2120, 2
  %v2123 = vrot.slane %v2063, 7
  %v2124 = vsel %vm745, %v2122, %v2123
  %v2125 = vrot.slane %v2123, 2
  %v2142 = vmax.f32 %v2048, %v2083
  %v2143 = vmax.f32 %v2049, %v2086
  %v2144 = vmax.f32 %v2050, %v2089
  %v2145 = vmax.f32 %v2051, %v2092
  %v2146 = vmax.f32 %v2052, %v2095
  %v2147 = vmax.f32 %v2053, %v2098
  %v2148 = vmax.f32 %v2054, %v2101
  %v2149 = vmax.f32 %v2055, %v2102
  %v2150 = vmax.f32 %v2056, %v2106
  %v2151 = vmax.f32 %v2057, %v2109
  %v2152 = vmax.f32 %v2058, %v2112
  %v2153 = vmax.f32 %v2059, %v2115
  %v2154 = vmax.f32 %v2060, %v2118
  %v2155 = vmax.f32 %v2061, %v2121
  %v2156 = vmax.f32 %v2062, %v2124
  %v2157 = vmax.f32 %v2063, %v2125
  %v2158 = vlaneseq
  %v2159 = vshrl.u32 %v2158, 7
  %v2160 = vadd.s32 %v2159, 8
  %vm2161 = vcmp.lt.s32.totalorder %v2159, 0
  %v2162 = vsub.s32 0, %v2159
  %v2163 = vsel %vm2161, %v2162, %v2159
  %v2164 = vshrl.u32 %v2163, 1
  %v2165 = vand.u32 %v2163, 1
  %v2166 = vsub.s32 0, %v2165
  %v2167 = vsel %vm2161, %v2166, %v2165
  %vm2168 = vcmp.lt.s32.totalorder %v2160, 0
  %v2169 = vsub.s32 0, %v2160
  %v2170 = vsel %vm2168, %v2169, %v2160
  %v2171 = vshrl.u32 %v2170, 1
  %v2172 = vand.u32 %v2170, 1
  %v2173 = vsub.s32 0, %v2172
  %v2174 = vsel %vm2168, %v2173, %v2172
  %vm2175 = vcmp.ne.s32.totalorder %v2167, 0
  %vm2176 = vcmp.ne.s32.totalorder %v2174, 0
  %vm2177 = vcmp.lt.s32.totalorder %v2167, 0
  %vm2178 = vcmp.lt.s32.totalorder %v2174, 0
  %vm2179 = vmand %vm2177, %vm2175
  %vm2180 = vmand %vm2178, %vm2176
  %v2181 = vadd.s32 %v2167, 2
  %v2182 = vadd.s32 %v2174, 2
  %v2183 = vsel %vm2179, %v2181, %v2167
  %v2184 = vsel %vm2180, %v2182, %v2174
  %vm2185 = vcmp.eq.s32.totalorder %v2183, 0
  %vm2186 = vcmp.eq.s32.totalorder %v2184, 0
  %v2203 = vcombine.low %v2142, %v2143
  %v2204 = vcombine.low %v2144, %v2145
  %v2206 = vunpack.c.l.s4 1983009808
  %v2207 = vunpack.c.0.s8 %v2206
  %v2208 = vlaneseq
  %v2209 = vshrl.u32 %v2208, 7
  %v2210 = vsub.s32 %v2207, %v2209
  %v2211 = vrot.slane %v2203, %v2210
  %v2213 = vunpack.c.l.s4 1983009808
  %v2214 = vunpack.c.0.s8 %v2213
  %v2215 = vlaneseq
  %v2216 = vshrl.u32 %v2215, 7
  %v2217 = vsub.s32 %v2214, %v2216
  %v2218 = vrot.slane %v2204, %v2217
  %v2219 = vcombine.low %v2211, %v2218
  %v2220 = vcombine.low %v2146, %v2147
  %v2221 = vcombine.low %v2148, %v2149
  %v2223 = vunpack.c.l.s4 1983009808
  %v2224 = vunpack.c.0.s8 %v2223
  %v2225 = vlaneseq
  %v2226 = vshrl.u32 %v2225, 7
  %v2227 = vsub.s32 %v2224, %v2226
  %v2228 = vrot.slane %v2220, %v2227
  %v2230 = vunpack.c.l.s4 1983009808
  %v2231 = vunpack.c.0.s8 %v2230
  %v2232 = vlaneseq
  %v2233 = vshrl.u32 %v2232, 7
  %v2234 = vsub.s32 %v2231, %v2233
  %v2235 = vrot.slane %v2221, %v2234
  %v2236 = vcombine.low %v2228, %v2235
  %v2237 = vcombine.low %v2150, %v2151
  %v2238 = vcombine.low %v2152, %v2153
  %v2240 = vunpack.c.l.s4 1983009808
  %v2241 = vunpack.c.0.s8 %v2240
  %v2242 = vlaneseq
  %v2243 = vshrl.u32 %v2242, 7
  %v2244 = vsub.s32 %v2241, %v2243
  %v2245 = vrot.slane %v2237, %v2244
  %v2247 = vunpack.c.l.s4 1983009808
  %v2248 = vunpack.c.0.s8 %v2247
  %v2249 = vlaneseq
  %v2250 = vshrl.u32 %v2249, 7
  %v2251 = vsub.s32 %v2248, %v2250
  %v2252 = vrot.slane %v2238, %v2251
  %v2253 = vcombine.low %v2245, %v2252
  %v2254 = vcombine.low %v2154, %v2155
  %v2255 = vcombine.low %v2156, %v2157
  %v2257 = vunpack.c.l.s4 1983009808
  %v2258 = vunpack.c.0.s8 %v2257
  %v2259 = vlaneseq
  %v2260 = vshrl.u32 %v2259, 7
  %v2261 = vsub.s32 %v2258, %v2260
  %v2262 = vrot.slane %v2254, %v2261
  %v2264 = vunpack.c.l.s4 1983009808
  %v2265 = vunpack.c.0.s8 %v2264
  %v2266 = vlaneseq
  %v2267 = vshrl.u32 %v2266, 7
  %v2268 = vsub.s32 %v2265, %v2267
  %v2269 = vrot.slane %v2255, %v2268
  %v2270 = vcombine.low %v2262, %v2269
  %v2275 = vsel %vm2185, %v2219, 0.0
  %v2276 = vsel %vm2186, %v2236, 0.0
  %v2277 = vsel %vm2185, %v2253, 0.0
  %v2278 = vsel %vm2186, %v2270, 0.0
  %vm2279 = vcmask 1046528
  %v2280 = vsel %vm2279, %v2276, 0.0
  %v2281 = vadd.f32 %v2275, %v2280
  %v2282 = vrot.slane %v2281, 4
  %v2283 = vadd.f32 %v2281, %v2282
  %v2284 = vrot.slane %v2283, 2
  %v2285 = vadd.f32 %v2283, %v2284
  %v2286 = vrot.slane %v2285, 1
  %v2287 = vadd.f32 %v2285, %v2286
  %v2288 = vsel %vm2279, %v2278, 0.0
  %v2289 = vadd.f32 %v2277, %v2288
  %v2290 = vrot.slane %v2289, 4
  %v2291 = vadd.f32 %v2289, %v2290
  %v2292 = vrot.slane %v2291, 2
  %v2293 = vadd.f32 %v2291, %v2292
  %v2294 = vrot.slane %v2293, 1
  %v2295 = vadd.f32 %v2293, %v2294
  %v2296 = vmul.f32 %v2287, 0.125
  %v2297 = vmul.f32 %v2295, 0.125
  %vm2300 = vcmask 1041409
  %v2301 = vsel %vm2300, %v2297, %v2296
  %2303 = vst [vmem:[%s4] sm:$0x3] %v2301
  // Predicated region
  $region18: #{cnn1d_forward.1} parent=0 // pred_check
    _
  $region19: #{cnn1d_forward.1} parent=0 // pred_check_branch
    %2305 = sbr.rel (0) target = $region21
  $region20: #{cnn1d_forward.1} parent=0 // pred_region
    _
  $region21: #{cnn1d_forward.1} parent=0 // pred_fallthru
    _
  // Predicated region
  $region22: #{cnn1d_forward.1} parent=0 // pred_check
    _
  $region23: #{cnn1d_forward.1} parent=0 // pred_check_branch
    %2307 = sbr.rel (0) target = $region25
  $region24: #{cnn1d_forward.1} parent=0 // pred_region
    _
  $region25: #{cnn1d_forward.1} parent=0 // pred_fallthru
    _

</llo_original>
